<compile_context>
chip_gen: v5e
topology: v5e:2x2
jax: 0.10.0
libtpu: 0.0.40
codegen_flags: <defaults>
</compile_context>

<pallas_src>
import jax
import jax.numpy as jnp
import numpy as np
from jax.experimental import pallas as pl
from jax.experimental.pallas import tpu as pltpu


def _round_up(x, m):
    return (x + m - 1) // m * m


# ----------------------------------------------------------------------------
# Bilinear upsample matching torch.nn.functional.interpolate(mode='bilinear',
# align_corners=False).  Plain-JAX glue.
# ----------------------------------------------------------------------------
def _bilinear_upsample_nchw(x, out_hw):
    B, C, h, w = x.shape
    out_h, out_w = out_hw
    scale_h = h / out_h
    scale_w = w / out_w
    ys = jnp.maximum((jnp.arange(out_h, dtype=jnp.float32) + 0.5) * scale_h - 0.5, 0.0)
    xs = jnp.maximum((jnp.arange(out_w, dtype=jnp.float32) + 0.5) * scale_w - 0.5, 0.0)
    y0 = jnp.clip(jnp.floor(ys).astype(jnp.int32), 0, h - 1)
    x0 = jnp.clip(jnp.floor(xs).astype(jnp.int32), 0, w - 1)
    y1 = jnp.minimum(y0 + 1, h - 1)
    x1 = jnp.minimum(x0 + 1, w - 1)
    wy = (ys - y0.astype(jnp.float32))[None, None, :, None]
    wx = (xs - x0.astype(jnp.float32))[None, None, None, :]
    top = x[:, :, y0, :]
    bot = x[:, :, y1, :]
    t = top[:, :, :, x0] * (1.0 - wx) + top[:, :, :, x1] * wx
    b = bot[:, :, :, x0] * (1.0 - wx) + bot[:, :, :, x1] * wx
    return t * (1.0 - wy) + b * wy


# ----------------------------------------------------------------------------
# Pallas kernel builder (all shapes static per layer instance).
# ----------------------------------------------------------------------------
def _build_refinement_kernel(H, W, cinp, cmid_p, m_p, dot_dtype):
    WP = W + 2                                  # padded image width
    LQ = H * WP                                 # real flat length of the q frame
    OFF0 = WP + 1                               # flat offset of output pixel (0,0)
    # LQP >= LQ + WP + 1 so the masked-to-zero tail of the interior store also
    # provides the bottom-row padding read by conv2_2's taps.
    LQP = _round_up(LQ + WP + 1, 128)           # lane-dense padded q length
    LXP = _round_up(2 * WP + 2 + LQP, 128)      # padded flat-input length
    ALIGN_OFF = _round_up(OFF0, 128)            # lane-aligned start of x2 interior
    SHIFT = ALIGN_OFF - OFF0                    # x2 scratch index = flat index + SHIFT
    LX2 = _round_up(SHIFT + 2 * WP + 2 + LQP, 128)
    TAPS = tuple(dy * WP + dx for dy in range(3) for dx in range(3))

    def kernel(x_ref, mask_ref, w12_ref, b12_ref, w22_ref, b22_ref, w3_ref,
               o_ref, xstk_ref, x2_ref, x2stk_ref, cat_ref):
        # x_ref   : [cinp, LXP]  f32  zero-padded flat input (up ++ feature)
        # mask    : [1, LQP]     f32  1.0 where q is a real output pixel
        # w12     : [2*cmid_p, 9*cinp]   fused conv1|conv2_1, K-major taps
        # w22     : [cmid_p, 9*cmid_p]
        # w3      : [m_p, 2*cmid_p]
        # o_ref   : [m_p, LQP]   f32
        # xstk    : [9*cinp, LQP]        stacked tap slices of x (K axis)
        # x2      : [cmid_p, LX2]        lane-aligned re-padded conv2_1 output
        # x2stk   : [9*cmid_p, LQP]      stacked tap slices of x2
        # cat     : [2*cmid_p, LQP]      conv3 input: [out1 ; out22]

        # ---- stack the 9 lane-shifted slices of x along K (stores are
        #      sublane/lane aligned; the shifted reads go through the load path)
        for t, off in enumerate(TAPS):
            xstk_ref[pl.ds(t * cinp, cinp), :] = (
                x_ref[:, pl.ds(off, LQP)].astype(dot_dtype))

        # ---- fused conv1 / conv2_1: ONE MXU dot (K = 9*cinp), f32 accumulate
        out12 = jnp.dot(w12_ref[...], xstk_ref[...],
                        preferred_element_type=jnp.float32)
        out12 = jnp.maximum(out12 + b12_ref[...], 0.0)      # [2*cmid_p, LQP] f32

        # conv1 half -> first rows of conv3's input buffer (8-row tile aligned)
        cat_ref[pl.ds(0, cmid_p), :] = out12[:cmid_p].astype(dot_dtype)

        # conv2_1 half -> masked, stored lane-aligned as the re-padded x2 image.
        # Border strips are tiny (<= 2 vregs/row-group); zeroed every step so the
        # kernel stays correct when the "parallel" grid is sharded across cores.
        x2_ref[:, pl.ds(0, ALIGN_OFF)] = jnp.zeros((cmid_p, ALIGN_OFF), dot_dtype)
        if LX2 > ALIGN_OFF + LQP:
            tail = LX2 - ALIGN_OFF - LQP
            x2_ref[:, pl.ds(ALIGN_OFF + LQP, tail)] = (
                jnp.zeros((cmid_p, tail), dot_dtype))
        x2_ref[:, pl.ds(ALIGN_OFF, LQP)] = (
            (out12[cmid_p:] * mask_ref[...]).astype(dot_dtype))

        # ---- conv2_2: same stacked-K trick on the x2 image
        for t, off in enumerate(TAPS):
            x2stk_ref[pl.ds(t * cmid_p, cmid_p), :] = (
                x2_ref[:, pl.ds(SHIFT + off, LQP)])

        out22 = jnp.dot(w22_ref[...], x2stk_ref[...],
                        preferred_element_type=jnp.float32)
        out22 = jnp.maximum(out22 + b22_ref[...], 0.0)
        cat_ref[pl.ds(cmid_p, cmid_p), :] = out22.astype(dot_dtype)

        # ---- conv3 (1x1, no bias): single dot over the concatenated buffer,
        #      plus the residual up-sampled motion field (first rows of x,
        #      shifted into the q frame).  Rows >= m / lanes >= LQ are garbage
        #      and cropped by the wrapper.
        res = jnp.dot(w3_ref[...], cat_ref[...],
                      preferred_element_type=jnp.float32)
        o_ref[...] = x_ref[pl.ds(0, m_p), pl.ds(OFF0, LQP)] + res

    dims = dict(WP=WP, LQ=LQ, LQP=LQP, LXP=LXP, OFF0=OFF0,
                ALIGN_OFF=ALIGN_OFF, SHIFT=SHIFT, LX2=LX2)
    return kernel, dims


# ----------------------------------------------------------------------------
# Module wrapper
# ----------------------------------------------------------------------------
class RefinementLayerPallas:
    def __init__(self, num_channel, dims, num_motion_fields=3, key=None,
                 dot_dtype=jnp.float32):
        self.num_channel = num_channel
        self.num_mid_channel = max(4, num_channel)
        self.dims = tuple(dims)
        self.num_motion_fields = num_motion_fields
        self._dot_dtype = dot_dtype

        if key is None:
            key = jax.random.PRNGKey(0)
        ks = jax.random.split(key, 7)
        cin = num_motion_fields + num_channel
        cmid = self.num_mid_channel
        m = num_motion_fields
        self._cin = cin
        self._cinp = _round_up(cin, 8)      # input channels -> sublane multiple
        self._cmid_p = _round_up(cmid, 8)   # mid channels   -> sublane multiple
        self._m_p = _round_up(m, 8)         # output rows    -> sublane multiple

        def xavier(k, shape):  # xavier-uniform style init, OIHW
            o, i, kh, kw = shape
            fan_in, fan_out = i * kh * kw, o * kh * kw
            bound = float(np.sqrt(6.0 / (fan_in + fan_out)))
            return jax.random.uniform(k, shape, jnp.float32, -bound, bound)

        # PyTorch-layout (OIHW) parameters (reference / state-dict layout)
        self._p = {
            "w1": xavier(ks[0], (cmid, cin, 3, 3)),
            "b1": jax.random.uniform(ks[1], (cmid,), jnp.float32, -0.1, 0.1),
            "w21": xavier(ks[2], (cmid, cin, 3, 3)),
            "b21": jax.random.uniform(ks[3], (cmid,), jnp.float32, -0.1, 0.1),
            "w22": xavier(ks[4], (cmid, cmid, 3, 3)),
            "b22": jax.random.uniform(ks[5], (cmid,), jnp.float32, -0.1, 0.1),
            "w3": xavier(ks[6], (m, 2 * cmid, 1, 1)),
        }

        cinp, cmid_p, m_p = self._cinp, self._cmid_p, self._m_p

        def taps(w_oihw):  # [O, I, 3, 3] -> [9, O, I]
            o, i, _, _ = w_oihw.shape
            return jnp.transpose(w_oihw, (2, 3, 0, 1)).reshape(9, o, i)

        # K-major fused conv weights: column index = tap*Cin + cin_channel,
        # matching the stacked-slice scratch layout inside the kernel.
        t1 = jnp.pad(taps(self._p["w1"]),
                     ((0, 0), (0, cmid_p - cmid), (0, cinp - cin)))
        t21 = jnp.pad(taps(self._p["w21"]),
                      ((0, 0), (0, cmid_p - cmid), (0, cinp - cin)))
        t12 = jnp.concatenate([t1, t21], axis=1)            # [9, 2*cmid_p, cinp]
        self._w12 = (jnp.transpose(t12, (1, 0, 2))
                     .reshape(2 * cmid_p, 9 * cinp).astype(dot_dtype))

        t22 = jnp.pad(taps(self._p["w22"]),
                      ((0, 0), (0, cmid_p - cmid), (0, cmid_p - cmid)))
        self._w22 = (jnp.transpose(t22, (1, 0, 2))
                     .reshape(cmid_p, 9 * cmid_p).astype(dot_dtype))

        padc = (0, cmid_p - cmid)
        self._b12 = jnp.concatenate([jnp.pad(self._p["b1"], padc),
                                     jnp.pad(self._p["b21"], padc)])[:, None]
        self._b22 = jnp.pad(self._p["b22"], padc)[:, None]

        w3_2d = self._p["w3"][:, :, 0, 0]                   # [m, 2*cmid]
        w3a = jnp.pad(w3_2d[:, :cmid], ((0, 0), padc))      # applies to out1
        w3b = jnp.pad(w3_2d[:, cmid:], ((0, 0), padc))      # applies to out22
        self._w3 = jnp.pad(jnp.concatenate([w3a, w3b], axis=1),
                           ((0, m_p - m), (0, 0))).astype(dot_dtype)

        self._kernel, self._d = _build_refinement_kernel(
            self.dims[0], self.dims[1], cinp, cmid_p, m_p, dot_dtype)

    def params_oihw(self):
        return self._p

    def __call__(self, motion_field, feature):
        H, W = self.dims
        HP = H + 2
        m = self.num_motion_fields
        cin, cinp, cmid_p, m_p = self._cin, self._cinp, self._cmid_p, self._m_p
        d = self._d
        WP, LQ, LQP, LXP, LX2 = d["WP"], d["LQ"], d["LQP"], d["LXP"], d["LX2"]
        sdt = self._dot_dtype

        up = _bilinear_upsample_nchw(motion_field, self.dims)     # [B, m, H, W]
        x = jnp.concatenate([up, feature], axis=1)                # [B, cin, H, W]
        B = x.shape[0]
        # zero-pad: channels -> cinp, spatial border of 1, flatten, pad lanes
        x = jnp.pad(x, ((0, 0), (0, cinp - cin), (1, 1), (1, 1)))
        x = x.reshape(B, cinp, HP * WP)
        x = jnp.pad(x, ((0, 0), (0, 0), (0, LXP - HP * WP)))      # [B, cinp, LXP]

        q = jnp.arange(LQP, dtype=jnp.int32)
        mask = (((q % WP) < W) & (q < LQ)).astype(jnp.float32)[None, :]

        out_q = pl.pallas_call(
            self._kernel,
            out_shape=jax.ShapeDtypeStruct((B, m_p, LQP), jnp.float32),
            grid_spec=pltpu.PrefetchScalarGridSpec(
                num_scalar_prefetch=0,
                grid=(B,),
                in_specs=[
                    pl.BlockSpec((None, cinp, LXP), lambda b: (b, 0, 0)),
                    pl.BlockSpec((1, LQP), lambda b: (0, 0)),
                    pl.BlockSpec((2 * cmid_p, 9 * cinp), lambda b: (0, 0)),
                    pl.BlockSpec((2 * cmid_p, 1), lambda b: (0, 0)),
                    pl.BlockSpec((cmid_p, 9 * cmid_p), lambda b: (0, 0)),
                    pl.BlockSpec((cmid_p, 1), lambda b: (0, 0)),
                    pl.BlockSpec((m_p, 2 * cmid_p), lambda b: (0, 0)),
                ],
                out_specs=pl.BlockSpec((None, m_p, LQP), lambda b: (b, 0, 0)),
                scratch_shapes=[
                    pltpu.VMEM((9 * cinp, LQP), sdt),      # stacked x taps
                    pltpu.VMEM((cmid_p, LX2), sdt),        # re-padded x2 image
                    pltpu.VMEM((9 * cmid_p, LQP), sdt),    # stacked x2 taps
                    pltpu.VMEM((2 * cmid_p, LQP), sdt),    # conv3 input [out1;out22]
                ],
            ),
            compiler_params=pltpu.CompilerParams(
                dimension_semantics=("parallel",),
                vmem_limit_bytes=32 * 1024 * 1024),
        )(x, mask, self._w12, self._b12, self._w22, self._b22, self._w3)

        # lane-dense kernel output is [B, m_p, LQP]; crop padded rows / lanes.
        return out_q[:, :m, :LQ].reshape(B, m, H, WP)[:, :, :, :W]   # NCHW


# ----------------------------------------------------------------------------
# Pure-JAX reference (for correctness check only)
# ----------------------------------------------------------------------------
def _ref_forward(params, motion_field, feature, dims):
    up = _bilinear_upsample_nchw(motion_field, dims)
    x = jnp.concatenate([up, feature], axis=1)

    def conv(v, w, b, pad):
        y = jax.lax.conv_general_dilated(
            v, w, (1, 1), [(pad, pad), (pad, pad)],
            dimension_numbers=("NCHW", "OIHW", "NCHW"))
        if b is not None:
            y = y + b[None, :, None, None]
        return y

    o1 = jax.nn.relu(conv(x, params["w1"], params["b1"], 1))
    o2 = jax.nn.relu(conv(x, params["w21"], params["b21"], 1))
    o2 = jax.nn.relu(conv(o2, params["w22"], params["b22"], 1))
    cat = jnp.concatenate([o1, o2], axis=1)
    return up + conv(cat, params["w3"], None, 0)


if __name__ == "__main__":
    key = jax.random.PRNGKey(0)
    k_mf, k_feat, k_params = jax.random.split(key, 3)

    B, m, c = 2, 3, 4
    h1, w1 = 8, 8
    dims = (16, 16)

    motion_field = jax.random.normal(k_mf, (B, m, h1, w1), jnp.float32)
    feature = jax.random.normal(k_feat, (B, c, dims[0], dims[1]), jnp.float32)

    # f32 MXU-operand path: strict check against the pure-JAX reference.
    layer = RefinementLayerPallas(num_channel=c, dims=dims,
                                  num_motion_fields=m, key=k_params)
    out = jax.block_until_ready(layer(motion_field, feature))
    assert out.shape == (B, m, dims[0], dims[1])

    ref = _ref_forward(layer.params_oihw(), motion_field, feature, dims)
    np.testing.assert_allclose(np.asarray(out), np.asarray(ref),
                               rtol=1e-4, atol=1e-4)

    # bf16 MXU-operand path (f32 accumulation / elementwise): looser tolerance.
    layer_bf16 = RefinementLayerPallas(num_channel=c, dims=dims,
                                       num_motion_fields=m, key=k_params,
                                       dot_dtype=jnp.bfloat16)
    out_bf16 = jax.block_until_ready(layer_bf16(motion_field, feature))
    np.testing.assert_allclose(np.asarray(out_bf16), np.asarray(ref),
                               rtol=5e-2, atol=5e-2)

    print("KERNEL_OK")
</pallas_src>

<mosaic_0001>
module attributes {stable_mosaic.version = 11 : i64} {
  func.func @kernel(%arg0: i32, %arg1: memref<1x8x512xf32, #tpu.memory_space<vmem>>, %arg2: memref<1x384xf32, #tpu.memory_space<vmem>>, %arg3: memref<16x72xf32, #tpu.memory_space<vmem>>, %arg4: memref<16x1xf32, #tpu.memory_space<vmem>>, %arg5: memref<8x72xf32, #tpu.memory_space<vmem>>, %arg6: memref<8x1xf32, #tpu.memory_space<vmem>>, %arg7: memref<8x16xf32, #tpu.memory_space<vmem>>, %arg8: memref<1x8x384xf32, #tpu.memory_space<vmem>>, %arg9: memref<72x384xf32, #tpu.memory_space<vmem>>, %arg10: memref<8x640xf32, #tpu.memory_space<vmem>>, %arg11: memref<72x384xf32, #tpu.memory_space<vmem>>, %arg12: memref<16x384xf32, #tpu.memory_space<vmem>>) attributes {dimension_semantics = [#tpu.dimension_semantics<parallel>], iteration_bounds = array<i64: 2>, scalar_prefetch = 0 : i64, scratch_operands = 4 : i64, tpu.core_type = #tpu.core_type<tc>, window_params = [{transform_indices = @transform_0, window_bounds = array<i64: 1, 8, 512>}, {pipeline_mode = #tpu.pipeline_mode<synchronous>, transform_indices = @transform_1, window_bounds = array<i64: 1, 384>}, {pipeline_mode = #tpu.pipeline_mode<synchronous>, transform_indices = @transform_2, window_bounds = array<i64: 16, 72>}, {pipeline_mode = #tpu.pipeline_mode<synchronous>, transform_indices = @transform_3, window_bounds = array<i64: 16, 1>}, {pipeline_mode = #tpu.pipeline_mode<synchronous>, transform_indices = @transform_4, window_bounds = array<i64: 8, 72>}, {pipeline_mode = #tpu.pipeline_mode<synchronous>, transform_indices = @transform_5, window_bounds = array<i64: 8, 1>}, {pipeline_mode = #tpu.pipeline_mode<synchronous>, transform_indices = @transform_6, window_bounds = array<i64: 8, 16>}, {transform_indices = @transform_7, window_bounds = array<i64: 1, 8, 384>}]} {
    %c0 = arith.constant 0 : index
    %c0_0 = arith.constant 0 : index
    %c0_1 = arith.constant 0 : index
    %0 = vector.load %arg1[%c0, %c0_0, %c0_1] : memref<1x8x512xf32, #tpu.memory_space<vmem>>, vector<1x8x384xf32>
    %1 = vector.shape_cast %0 : vector<1x8x384xf32> to vector<8x384xf32>
    %c0_2 = arith.constant 0 : index
    %c0_3 = arith.constant 0 : index
    %2 = vector.load %arg9[%c0_2, %c0_3] : memref<72x384xf32, #tpu.memory_space<vmem>>, vector<8x384xf32>
    tpu.vector_store %arg9[%c0_2, %c0_3], %1 {strides = array<i32>} : memref<72x384xf32, #tpu.memory_space<vmem>>, vector<8x384xf32>,
    %c0_4 = arith.constant 0 : index
    %c0_5 = arith.constant 0 : index
    %c1 = arith.constant 1 : index
    %3 = vector.load %arg1[%c0_4, %c0_5, %c1] : memref<1x8x512xf32, #tpu.memory_space<vmem>>, vector<1x8x384xf32>
    %4 = vector.shape_cast %3 : vector<1x8x384xf32> to vector<8x384xf32>
    %c8 = arith.constant 8 : index
    %c0_6 = arith.constant 0 : index
    %5 = vector.load %arg9[%c8, %c0_6] : memref<72x384xf32, #tpu.memory_space<vmem>>, vector<8x384xf32>
    tpu.vector_store %arg9[%c8, %c0_6], %4 {strides = array<i32>} : memref<72x384xf32, #tpu.memory_space<vmem>>, vector<8x384xf32>,
    %c0_7 = arith.constant 0 : index
    %c0_8 = arith.constant 0 : index
    %c2 = arith.constant 2 : index
    %6 = vector.load %arg1[%c0_7, %c0_8, %c2] : memref<1x8x512xf32, #tpu.memory_space<vmem>>, vector<1x8x384xf32>
    %7 = vector.shape_cast %6 : vector<1x8x384xf32> to vector<8x384xf32>
    %c16 = arith.constant 16 : index
    %c0_9 = arith.constant 0 : index
    %8 = vector.load %arg9[%c16, %c0_9] : memref<72x384xf32, #tpu.memory_space<vmem>>, vector<8x384xf32>
    tpu.vector_store %arg9[%c16, %c0_9], %7 {strides = array<i32>} : memref<72x384xf32, #tpu.memory_space<vmem>>, vector<8x384xf32>,
    %c0_10 = arith.constant 0 : index
    %c0_11 = arith.constant 0 : index
    %c18 = arith.constant 18 : index
    %9 = vector.load %arg1[%c0_10, %c0_11, %c18] : memref<1x8x512xf32, #tpu.memory_space<vmem>>, vector<1x8x384xf32>
    %10 = vector.shape_cast %9 : vector<1x8x384xf32> to vector<8x384xf32>
    %c24 = arith.constant 24 : index
    %c0_12 = arith.constant 0 : index
    %11 = vector.load %arg9[%c24, %c0_12] : memref<72x384xf32, #tpu.memory_space<vmem>>, vector<8x384xf32>
    tpu.vector_store %arg9[%c24, %c0_12], %10 {strides = array<i32>} : memref<72x384xf32, #tpu.memory_space<vmem>>, vector<8x384xf32>,
    %c0_13 = arith.constant 0 : index
    %c0_14 = arith.constant 0 : index
    %c19 = arith.constant 19 : index
    %12 = vector.load %arg1[%c0_13, %c0_14, %c19] : memref<1x8x512xf32, #tpu.memory_space<vmem>>, vector<1x8x384xf32>
    %13 = vector.shape_cast %12 : vector<1x8x384xf32> to vector<8x384xf32>
    %c32 = arith.constant 32 : index
    %c0_15 = arith.constant 0 : index
    %14 = vector.load %arg9[%c32, %c0_15] : memref<72x384xf32, #tpu.memory_space<vmem>>, vector<8x384xf32>
    tpu.vector_store %arg9[%c32, %c0_15], %13 {strides = array<i32>} : memref<72x384xf32, #tpu.memory_space<vmem>>, vector<8x384xf32>,
    %c0_16 = arith.constant 0 : index
    %c0_17 = arith.constant 0 : index
    %c20 = arith.constant 20 : index
    %15 = vector.load %arg1[%c0_16, %c0_17, %c20] : memref<1x8x512xf32, #tpu.memory_space<vmem>>, vector<1x8x384xf32>
    %16 = vector.shape_cast %15 : vector<1x8x384xf32> to vector<8x384xf32>
    %c40 = arith.constant 40 : index
    %c0_18 = arith.constant 0 : index
    %17 = vector.load %arg9[%c40, %c0_18] : memref<72x384xf32, #tpu.memory_space<vmem>>, vector<8x384xf32>
    tpu.vector_store %arg9[%c40, %c0_18], %16 {strides = array<i32>} : memref<72x384xf32, #tpu.memory_space<vmem>>, vector<8x384xf32>,
    %c0_19 = arith.constant 0 : index
    %c0_20 = arith.constant 0 : index
    %c36 = arith.constant 36 : index
    %18 = vector.load %arg1[%c0_19, %c0_20, %c36] : memref<1x8x512xf32, #tpu.memory_space<vmem>>, vector<1x8x384xf32>
    %19 = vector.shape_cast %18 : vector<1x8x384xf32> to vector<8x384xf32>
    %c48 = arith.constant 48 : index
    %c0_21 = arith.constant 0 : index
    %20 = vector.load %arg9[%c48, %c0_21] : memref<72x384xf32, #tpu.memory_space<vmem>>, vector<8x384xf32>
    tpu.vector_store %arg9[%c48, %c0_21], %19 {strides = array<i32>} : memref<72x384xf32, #tpu.memory_space<vmem>>, vector<8x384xf32>,
    %c0_22 = arith.constant 0 : index
    %c0_23 = arith.constant 0 : index
    %c37 = arith.constant 37 : index
    %21 = vector.load %arg1[%c0_22, %c0_23, %c37] : memref<1x8x512xf32, #tpu.memory_space<vmem>>, vector<1x8x384xf32>
    %22 = vector.shape_cast %21 : vector<1x8x384xf32> to vector<8x384xf32>
    %c56 = arith.constant 56 : index
    %c0_24 = arith.constant 0 : index
    %23 = vector.load %arg9[%c56, %c0_24] : memref<72x384xf32, #tpu.memory_space<vmem>>, vector<8x384xf32>
    tpu.vector_store %arg9[%c56, %c0_24], %22 {strides = array<i32>} : memref<72x384xf32, #tpu.memory_space<vmem>>, vector<8x384xf32>,
    %c0_25 = arith.constant 0 : index
    %c0_26 = arith.constant 0 : index
    %c38 = arith.constant 38 : index
    %24 = vector.load %arg1[%c0_25, %c0_26, %c38] : memref<1x8x512xf32, #tpu.memory_space<vmem>>, vector<1x8x384xf32>
    %25 = vector.shape_cast %24 : vector<1x8x384xf32> to vector<8x384xf32>
    %c64 = arith.constant 64 : index
    %c0_27 = arith.constant 0 : index
    %26 = vector.load %arg9[%c64, %c0_27] : memref<72x384xf32, #tpu.memory_space<vmem>>, vector<8x384xf32>
    tpu.vector_store %arg9[%c64, %c0_27], %25 {strides = array<i32>} : memref<72x384xf32, #tpu.memory_space<vmem>>, vector<8x384xf32>,
    %c0_28 = arith.constant 0 : index
    %c0_29 = arith.constant 0 : index
    %27 = vector.load %arg3[%c0_28, %c0_29] : memref<16x72xf32, #tpu.memory_space<vmem>>, vector<16x72xf32>
    %c0_30 = arith.constant 0 : index
    %c0_31 = arith.constant 0 : index
    %28 = vector.load %arg9[%c0_30, %c0_31] : memref<72x384xf32, #tpu.memory_space<vmem>>, vector<72x384xf32>
    %cst = arith.constant dense<0.000000e+00> : vector<16x384xf32>
    %29 = tpu.matmul %27, %28, %cst {dimension_numbers = #tpu.dot_dimension_numbers<[1], [0], [0], [1], [0, 0, 1, 1], [], []>} : vector<16x72xf32>, vector<72x384xf32>, vector<16x384xf32> -> vector<16x384xf32>
    %c0_32 = arith.constant 0 : index
    %c0_33 = arith.constant 0 : index
    %30 = vector.load %arg4[%c0_32, %c0_33] : memref<16x1xf32, #tpu.memory_space<vmem>>, vector<16x1xf32>
    %31 = vector.broadcast %30 : vector<16x1xf32> to vector<16x384xf32>
    %32 = arith.addf %29, %31 : vector<16x384xf32>
    %cst_34 = arith.constant 0.000000e+00 : f32
    %33 = vector.broadcast %cst_34 : f32 to vector<16x384xf32>
    %34 = arith.maximumf %32, %33 : vector<16x384xf32>
    %35 = vector.extract_strided_slice %34 {offsets = [0, 0], sizes = [8, 384], strides = [1, 1]} : vector<16x384xf32> to vector<8x384xf32>
    %c0_35 = arith.constant 0 : index
    %c0_36 = arith.constant 0 : index
    %36 = vector.load %arg12[%c0_35, %c0_36] : memref<16x384xf32, #tpu.memory_space<vmem>>, vector<8x384xf32>
    tpu.vector_store %arg12[%c0_35, %c0_36], %35 {strides = array<i32>} : memref<16x384xf32, #tpu.memory_space<vmem>>, vector<8x384xf32>,
    %cst_37 = arith.constant 0.000000e+00 : f32
    %37 = vector.broadcast %cst_37 : f32 to vector<8x128xf32>
    %c0_38 = arith.constant 0 : index
    %c0_39 = arith.constant 0 : index
    %38 = vector.load %arg10[%c0_38, %c0_39] : memref<8x640xf32, #tpu.memory_space<vmem>>, vector<8x128xf32>
    tpu.vector_store %arg10[%c0_38, %c0_39], %37 {strides = array<i32>} : memref<8x640xf32, #tpu.memory_space<vmem>>, vector<8x128xf32>,
    %cst_40 = arith.constant 0.000000e+00 : f32
    %39 = vector.broadcast %cst_40 : f32 to vector<8x128xf32>
    %c0_41 = arith.constant 0 : index
    %c512 = arith.constant 512 : index
    %40 = vector.load %arg10[%c0_41, %c512] : memref<8x640xf32, #tpu.memory_space<vmem>>, vector<8x128xf32>
    tpu.vector_store %arg10[%c0_41, %c512], %39 {strides = array<i32>} : memref<8x640xf32, #tpu.memory_space<vmem>>, vector<8x128xf32>,
    %41 = vector.extract_strided_slice %34 {offsets = [8, 0], sizes = [8, 384], strides = [1, 1]} : vector<16x384xf32> to vector<8x384xf32>
    %c0_42 = arith.constant 0 : index
    %c0_43 = arith.constant 0 : index
    %42 = vector.load %arg2[%c0_42, %c0_43] : memref<1x384xf32, #tpu.memory_space<vmem>>, vector<1x384xf32>
    %43 = vector.broadcast %42 : vector<1x384xf32> to vector<8x384xf32>
    %44 = arith.mulf %41, %43 : vector<8x384xf32>
    %c0_44 = arith.constant 0 : index
    %c128 = arith.constant 128 : index
    %45 = vector.load %arg10[%c0_44, %c128] : memref<8x640xf32, #tpu.memory_space<vmem>>, vector<8x384xf32>
    tpu.vector_store %arg10[%c0_44, %c128], %44 {strides = array<i32>} : memref<8x640xf32, #tpu.memory_space<vmem>>, vector<8x384xf32>,
    %c0_45 = arith.constant 0 : index
    %c109 = arith.constant 109 : index
    %46 = vector.load %arg10[%c0_45, %c109] : memref<8x640xf32, #tpu.memory_space<vmem>>, vector<8x384xf32>
    %c0_46 = arith.constant 0 : index
    %c0_47 = arith.constant 0 : index
    %47 = vector.load %arg11[%c0_46, %c0_47] : memref<72x384xf32, #tpu.memory_space<vmem>>, vector<8x384xf32>
    tpu.vector_store %arg11[%c0_46, %c0_47], %46 {strides = array<i32>} : memref<72x384xf32, #tpu.memory_space<vmem>>, vector<8x384xf32>,
    %c0_48 = arith.constant 0 : index
    %c110 = arith.constant 110 : index
    %48 = vector.load %arg10[%c0_48, %c110] : memref<8x640xf32, #tpu.memory_space<vmem>>, vector<8x384xf32>
    %c8_49 = arith.constant 8 : index
    %c0_50 = arith.constant 0 : index
    %49 = vector.load %arg11[%c8_49, %c0_50] : memref<72x384xf32, #tpu.memory_space<vmem>>, vector<8x384xf32>
    tpu.vector_store %arg11[%c8_49, %c0_50], %48 {strides = array<i32>} : memref<72x384xf32, #tpu.memory_space<vmem>>, vector<8x384xf32>,
    %c0_51 = arith.constant 0 : index
    %c111 = arith.constant 111 : index
    %50 = vector.load %arg10[%c0_51, %c111] : memref<8x640xf32, #tpu.memory_space<vmem>>, vector<8x384xf32>
    %c16_52 = arith.constant 16 : index
    %c0_53 = arith.constant 0 : index
    %51 = vector.load %arg11[%c16_52, %c0_53] : memref<72x384xf32, #tpu.memory_space<vmem>>, vector<8x384xf32>
    tpu.vector_store %arg11[%c16_52, %c0_53], %50 {strides = array<i32>} : memref<72x384xf32, #tpu.memory_space<vmem>>, vector<8x384xf32>,
    %c0_54 = arith.constant 0 : index
    %c127 = arith.constant 127 : index
    %52 = vector.load %arg10[%c0_54, %c127] : memref<8x640xf32, #tpu.memory_space<vmem>>, vector<8x384xf32>
    %c24_55 = arith.constant 24 : index
    %c0_56 = arith.constant 0 : index
    %53 = vector.load %arg11[%c24_55, %c0_56] : memref<72x384xf32, #tpu.memory_space<vmem>>, vector<8x384xf32>
    tpu.vector_store %arg11[%c24_55, %c0_56], %52 {strides = array<i32>} : memref<72x384xf32, #tpu.memory_space<vmem>>, vector<8x384xf32>,
    %c0_57 = arith.constant 0 : index
    %c128_58 = arith.constant 128 : index
    %54 = vector.load %arg10[%c0_57, %c128_58] : memref<8x640xf32, #tpu.memory_space<vmem>>, vector<8x384xf32>
    %c32_59 = arith.constant 32 : index
    %c0_60 = arith.constant 0 : index
    %55 = vector.load %arg11[%c32_59, %c0_60] : memref<72x384xf32, #tpu.memory_space<vmem>>, vector<8x384xf32>
    tpu.vector_store %arg11[%c32_59, %c0_60], %54 {strides = array<i32>} : memref<72x384xf32, #tpu.memory_space<vmem>>, vector<8x384xf32>,
    %c0_61 = arith.constant 0 : index
    %c129 = arith.constant 129 : index
    %56 = vector.load %arg10[%c0_61, %c129] : memref<8x640xf32, #tpu.memory_space<vmem>>, vector<8x384xf32>
    %c40_62 = arith.constant 40 : index
    %c0_63 = arith.constant 0 : index
    %57 = vector.load %arg11[%c40_62, %c0_63] : memref<72x384xf32, #tpu.memory_space<vmem>>, vector<8x384xf32>
    tpu.vector_store %arg11[%c40_62, %c0_63], %56 {strides = array<i32>} : memref<72x384xf32, #tpu.memory_space<vmem>>, vector<8x384xf32>,
    %c0_64 = arith.constant 0 : index
    %c145 = arith.constant 145 : index
    %58 = vector.load %arg10[%c0_64, %c145] : memref<8x640xf32, #tpu.memory_space<vmem>>, vector<8x384xf32>
    %c48_65 = arith.constant 48 : index
    %c0_66 = arith.constant 0 : index
    %59 = vector.load %arg11[%c48_65, %c0_66] : memref<72x384xf32, #tpu.memory_space<vmem>>, vector<8x384xf32>
    tpu.vector_store %arg11[%c48_65, %c0_66], %58 {strides = array<i32>} : memref<72x384xf32, #tpu.memory_space<vmem>>, vector<8x384xf32>,
    %c0_67 = arith.constant 0 : index
    %c146 = arith.constant 146 : index
    %60 = vector.load %arg10[%c0_67, %c146] : memref<8x640xf32, #tpu.memory_space<vmem>>, vector<8x384xf32>
    %c56_68 = arith.constant 56 : index
    %c0_69 = arith.constant 0 : index
    %61 = vector.load %arg11[%c56_68, %c0_69] : memref<72x384xf32, #tpu.memory_space<vmem>>, vector<8x384xf32>
    tpu.vector_store %arg11[%c56_68, %c0_69], %60 {strides = array<i32>} : memref<72x384xf32, #tpu.memory_space<vmem>>, vector<8x384xf32>,
    %c0_70 = arith.constant 0 : index
    %c147 = arith.constant 147 : index
    %62 = vector.load %arg10[%c0_70, %c147] : memref<8x640xf32, #tpu.memory_space<vmem>>, vector<8x384xf32>
    %c64_71 = arith.constant 64 : index
    %c0_72 = arith.constant 0 : index
    %63 = vector.load %arg11[%c64_71, %c0_72] : memref<72x384xf32, #tpu.memory_space<vmem>>, vector<8x384xf32>
    tpu.vector_store %arg11[%c64_71, %c0_72], %62 {strides = array<i32>} : memref<72x384xf32, #tpu.memory_space<vmem>>, vector<8x384xf32>,
    %c0_73 = arith.constant 0 : index
    %c0_74 = arith.constant 0 : index
    %64 = vector.load %arg5[%c0_73, %c0_74] : memref<8x72xf32, #tpu.memory_space<vmem>>, vector<8x72xf32>
    %c0_75 = arith.constant 0 : index
    %c0_76 = arith.constant 0 : index
    %65 = vector.load %arg11[%c0_75, %c0_76] : memref<72x384xf32, #tpu.memory_space<vmem>>, vector<72x384xf32>
    %cst_77 = arith.constant dense<0.000000e+00> : vector<8x384xf32>
    %66 = tpu.matmul %64, %65, %cst_77 {dimension_numbers = #tpu.dot_dimension_numbers<[1], [0], [0], [1], [0, 0, 1, 1], [], []>} : vector<8x72xf32>, vector<72x384xf32>, vector<8x384xf32> -> vector<8x384xf32>
    %c0_78 = arith.constant 0 : index
    %c0_79 = arith.constant 0 : index
    %67 = vector.load %arg6[%c0_78, %c0_79] : memref<8x1xf32, #tpu.memory_space<vmem>>, vector<8x1xf32>
    %68 = vector.broadcast %67 : vector<8x1xf32> to vector<8x384xf32>
    %69 = arith.addf %66, %68 : vector<8x384xf32>
    %cst_80 = arith.constant 0.000000e+00 : f32
    %70 = vector.broadcast %cst_80 : f32 to vector<8x384xf32>
    %71 = arith.maximumf %69, %70 : vector<8x384xf32>
    %c8_81 = arith.constant 8 : index
    %c0_82 = arith.constant 0 : index
    %72 = vector.load %arg12[%c8_81, %c0_82] : memref<16x384xf32, #tpu.memory_space<vmem>>, vector<8x384xf32>
    tpu.vector_store %arg12[%c8_81, %c0_82], %71 {strides = array<i32>} : memref<16x384xf32, #tpu.memory_space<vmem>>, vector<8x384xf32>,
    %c0_83 = arith.constant 0 : index
    %c0_84 = arith.constant 0 : index
    %73 = vector.load %arg7[%c0_83, %c0_84] : memref<8x16xf32, #tpu.memory_space<vmem>>, vector<8x16xf32>
    %c0_85 = arith.constant 0 : index
    %c0_86 = arith.constant 0 : index
    %74 = vector.load %arg12[%c0_85, %c0_86] : memref<16x384xf32, #tpu.memory_space<vmem>>, vector<16x384xf32>
    %cst_87 = arith.constant dense<0.000000e+00> : vector<8x384xf32>
    %75 = tpu.matmul %73, %74, %cst_87 {dimension_numbers = #tpu.dot_dimension_numbers<[1], [0], [0], [1], [0, 0, 1, 1], [], []>} : vector<8x16xf32>, vector<16x384xf32>, vector<8x384xf32> -> vector<8x384xf32>
    %c0_88 = arith.constant 0 : index
    %c0_89 = arith.constant 0 : index
    %c19_90 = arith.constant 19 : index
    %76 = vector.load %arg1[%c0_88, %c0_89, %c19_90] : memref<1x8x512xf32, #tpu.memory_space<vmem>>, vector<1x8x384xf32>
    %77 = vector.shape_cast %76 : vector<1x8x384xf32> to vector<8x384xf32>
    %78 = arith.addf %77, %75 : vector<8x384xf32>
    %c0_91 = arith.constant 0 : index
    %c0_92 = arith.constant 0 : index
    %c0_93 = arith.constant 0 : index
    %79 = vector.load %arg8[%c0_91, %c0_92, %c0_93] : memref<1x8x384xf32, #tpu.memory_space<vmem>>, vector<1x8x384xf32>
    %80 = vector.shape_cast %79 : vector<1x8x384xf32> to vector<8x384xf32>
    %81 = vector.shape_cast %78 : vector<8x384xf32> to vector<1x8x384xf32>
    tpu.vector_store %arg8[%c0_91, %c0_92, %c0_93], %81 {strides = array<i32>} : memref<1x8x384xf32, #tpu.memory_space<vmem>>, vector<1x8x384xf32>,
    return
  }
  func.func @transform_0(%arg0: i32) -> (i32, i32, i32) {
    %c0_i32 = arith.constant 0 : i32
    %c0_i32_0 = arith.constant 0 : i32
    %c0_i32_1 = arith.constant 0 : i32
    return %arg0, %c0_i32, %c0_i32_0 : i32, i32, i32
  }
  func.func @transform_1(%arg0: i32) -> (i32, i32) {
    %c0_i32 = arith.constant 0 : i32
    %c0_i32_0 = arith.constant 0 : i32
    %c0_i32_1 = arith.constant 0 : i32
    return %c0_i32, %c0_i32_0 : i32, i32
  }
  func.func @transform_2(%arg0: i32) -> (i32, i32) {
    %c0_i32 = arith.constant 0 : i32
    %c0_i32_0 = arith.constant 0 : i32
    %c0_i32_1 = arith.constant 0 : i32
    return %c0_i32, %c0_i32_0 : i32, i32
  }
  func.func @transform_3(%arg0: i32) -> (i32, i32) {
    %c0_i32 = arith.constant 0 : i32
    %c0_i32_0 = arith.constant 0 : i32
    %c0_i32_1 = arith.constant 0 : i32
    return %c0_i32, %c0_i32_0 : i32, i32
  }
  func.func @transform_4(%arg0: i32) -> (i32, i32) {
    %c0_i32 = arith.constant 0 : i32
    %c0_i32_0 = arith.constant 0 : i32
    %c0_i32_1 = arith.constant 0 : i32
    return %c0_i32, %c0_i32_0 : i32, i32
  }
  func.func @transform_5(%arg0: i32) -> (i32, i32) {
    %c0_i32 = arith.constant 0 : i32
    %c0_i32_0 = arith.constant 0 : i32
    %c0_i32_1 = arith.constant 0 : i32
    return %c0_i32, %c0_i32_0 : i32, i32
  }
  func.func @transform_6(%arg0: i32) -> (i32, i32) {
    %c0_i32 = arith.constant 0 : i32
    %c0_i32_0 = arith.constant 0 : i32
    %c0_i32_1 = arith.constant 0 : i32
    return %c0_i32, %c0_i32_0 : i32, i32
  }
  func.func @transform_7(%arg0: i32) -> (i32, i32, i32) {
    %c0_i32 = arith.constant 0 : i32
    %c0_i32_0 = arith.constant 0 : i32
    %c0_i32_1 = arith.constant 0 : i32
    return %arg0, %c0_i32, %c0_i32_0 : i32, i32, i32
  }
}

</mosaic_0001>

<llo_original>
// kernel: tpu_custom_call.1
$region0: #{tpu_custom_call.1}
  #allocation0 [shape = 'u32[]', space=smem, size = 0x4, offset = 0x4, fixed_abs, tag = 'smem constant byte address 0x4 - core index']
  #allocation1 [shape = 'u32[72,128]{1,0:T(1,128)}', space=vmem, size = 0x9000, scoped, tag = 'internal scratch']
  #allocation2 [shape = 'f32[72,384]{1,0:T(8,128)}', space=vmem, size = 0x1b000, scoped, tag = 'scratch operand']
  #allocation3 [shape = 'f32[8,640]{1,0:T(8,128)}', space=vmem, size = 0x5000, scoped, tag = 'scratch operand']
  #allocation4 [shape = 'f32[72,384]{1,0:T(8,128)}', space=vmem, size = 0x1b000, scoped, tag = 'scratch operand']
  #allocation5 [shape = 'f32[16,384]{1,0:T(8,128)}', space=vmem, size = 0x6000, scoped, tag = 'scratch operand']
  %s0 = inlined_call_operand.hbm [shape: f32[2,8,512], index: 0, kind: input, shape index: {}]
  %s1 = inlined_call_operand.hbm [shape: f32[1,384], index: 1, kind: input, shape index: {}]
  %s2 = inlined_call_operand.vmem [shape: f32[16,72], index: 2, kind: input, shape index: {}]
  %s3 = inlined_call_operand.vmem [shape: f32[16,1], index: 3, kind: input, shape index: {}]
  %s4 = inlined_call_operand.vmem [shape: f32[8,72], index: 4, kind: input, shape index: {}]
  %s5 = inlined_call_operand.vmem [shape: f32[8,1], index: 5, kind: input, shape index: {}]
  %s6 = inlined_call_operand.hbm [shape: f32[8,16], index: 6, kind: input, shape index: {}]
  %s7 = inlined_call_operand.hbm [shape: f32[2,8,384], index: 7, kind: output, shape index: {}]
  %s8 = sld [smem:[#allocation0]]
  $region73: #{tpu_custom_call.1} parent=0
    _
  %s10 = ssub.s32 1, %s8
  %s11 = scalar_select 0, %s10, %s8
  $region1: #{tpu_custom_call.1} parent=0
    #allocation6 [shape = 'u8[32768]{0}', space=vmem, size = 0x8000, scoped, tag = 'input window, operand 0']
    #allocation7 [shape = 's32[2]{0}', space=sflag, size = 0x8, scoped, tag = 'scoped memory for tpu_custom_call.1']
    #allocation8 [shape = 's32[2]{0}', space=sflag, size = 0x8, scoped, tag = 'scoped memory for tpu_custom_call.1']
    #allocation9 [shape = 'u8[1536]{0}', space=vmem, size = 0x800, scoped, tag = 'input window, operand 1, single buffered']
    #allocation10 [shape = 's32[1]{0}', space=sflag, size = 0x4, scoped, tag = 'scoped memory for tpu_custom_call.1']
    #allocation11 [shape = 'u8[4096]{0}', space=vmem, size = 0x1000, scoped, tag = 'input window, operand 6, single buffered']
    #allocation12 [shape = 'u8[24576]{0}', space=vmem, size = 0x6000, scoped, tag = 'output window, operand 0']
    %12 = vsyncpa [#allocation7], 0
    %s13 = scalar_lea.sflag [#allocation7], 1
    %14 = vsyncpa %s13, 0
    %15 = vsyncpa [#allocation10], 0
    %16 = vsyncpa [#allocation8], 0
    %s17 = scalar_lea.sflag [#allocation8], 1
    %18 = vsyncpa %s17, 0
    loop: start=0, step=1, limit=4
    $region2: #{tpu_custom_call.1} parent=1 // loop_pre_header
      _
    $region3: #{tpu_custom_call.1} parent=1 // loop_header
      %s20 = sphi 0, %s24
      %p21 = scmp.ge.s32.totalorder %s20, 4
      %s30 = sphi 0, %s32
      %s33 = sphi 0, %s30
      %s34 = sphi 0, %s33
      %s50 = sphi 0, %s34
      %s54 = sphi 0, %s54
      %s56 = sphi 0, %s54
      %s57 = sphi 0, %s56
      %s71 = sphi 0, %s57
      %s75 = sphi 0, %s75
      %s77 = sphi 0, %s75
      %s78 = sphi 0, %s77
      %s92 = sphi 0, %s78
      %s96 = sphi 0, %s96
      %s98 = sphi 0, %s96
      %s99 = sphi 0, %s98
      %s113 = sphi 0, %s99
      %s117 = sphi 0, %s117
      %s119 = sphi 0, %s117
      %s120 = sphi 0, %s119
      %s134 = sphi 0, %s120
      %s138 = sphi 0, %s138
      %s140 = sphi 0, %s138
      %s141 = sphi 0, %s140
      %s155 = sphi 0, %s141
      %s159 = sphi 0, %s159
      %s161 = sphi 0, %s159
      %s162 = sphi 0, %s161
      %s176 = sphi 0, %s162
      %s182 = sphi 0, %s184
      %s185 = sphi 0, %s182
      %s186 = sphi 0, %s185
      %s202 = sphi 0, %s186
    $region4: #{tpu_custom_call.1} parent=1 // loop_header_branch
      %23 = sbr.rel (%p21) target = $region8
    $region5: #{tpu_custom_call.1} parent=1 // loop_body
      %s25 = ssub.s32 %s20, 1
      %s26 = ssub.s32 %s20, 2
      %s27 = sadd.s32 %s20, 1
      %s28 = ssub.s32 %s20, %s27
      %p29 = scmp.eq.s32.totalorder %s28, 0
      %s31 = sadd.s32 %s30, 1
      %s32 = scalar_select %p29, %s30, %s31
      %p35 = pneg %p29
      %p36 = scmp.eq.s32.totalorder %s20, 1
      %p37 = por %p35, %p36
      %p38 = scmp.ne.s32.totalorder %s30, %s33
      %p39 = scmp.eq.s32.totalorder %s20, 0
      %p40 = por %p38, %p39
      %p41 = scmp.ne.s32.totalorder %s30, %s33
      %p42 = scmp.eq.s32.totalorder %s25, 1
      %p43 = por %p41, %p42
      %p44 = scmp.ne.s32.totalorder %s33, %s34
      %p45 = scmp.eq.s32.totalorder %s25, 0
      %p46 = por %p44, %p45
      %p47 = scmp.ne.s32.totalorder %s33, %s34
      %p48 = scmp.eq.s32.totalorder %s26, 1
      %p49 = por %p47, %p48
      %p51 = scmp.ne.s32.totalorder %s34, %s50
      %p52 = scmp.eq.s32.totalorder %s26, 0
      %p53 = por %p51, %p52
      %s55 = sadd.s32 %s54, 1
      %p58 = scmp.eq.s32.totalorder %s20, 1
      %p59 = scmp.ne.s32.totalorder %s54, %s56
      %p60 = scmp.eq.s32.totalorder %s20, 0
      %p61 = por %p59, %p60
      %p62 = scmp.ne.s32.totalorder %s54, %s56
      %p63 = scmp.eq.s32.totalorder %s25, 1
      %p64 = por %p62, %p63
      %p65 = scmp.ne.s32.totalorder %s56, %s57
      %p66 = scmp.eq.s32.totalorder %s25, 0
      %p67 = por %p65, %p66
      %p68 = scmp.ne.s32.totalorder %s56, %s57
      %p69 = scmp.eq.s32.totalorder %s26, 1
      %p70 = por %p68, %p69
      %p72 = scmp.ne.s32.totalorder %s57, %s71
      %p73 = scmp.eq.s32.totalorder %s26, 0
      %p74 = por %p72, %p73
      %s76 = sadd.s32 %s75, 1
      %p79 = scmp.eq.s32.totalorder %s20, 1
      %p80 = scmp.ne.s32.totalorder %s75, %s77
      %p81 = scmp.eq.s32.totalorder %s20, 0
      %p82 = por %p80, %p81
      %p83 = scmp.ne.s32.totalorder %s75, %s77
      %p84 = scmp.eq.s32.totalorder %s25, 1
      %p85 = por %p83, %p84
      %p86 = scmp.ne.s32.totalorder %s77, %s78
      %p87 = scmp.eq.s32.totalorder %s25, 0
      %p88 = por %p86, %p87
      %p89 = scmp.ne.s32.totalorder %s77, %s78
      %p90 = scmp.eq.s32.totalorder %s26, 1
      %p91 = por %p89, %p90
      %p93 = scmp.ne.s32.totalorder %s78, %s92
      %p94 = scmp.eq.s32.totalorder %s26, 0
      %p95 = por %p93, %p94
      %s97 = sadd.s32 %s96, 1
      %p100 = scmp.eq.s32.totalorder %s20, 1
      %p101 = scmp.ne.s32.totalorder %s96, %s98
      %p102 = scmp.eq.s32.totalorder %s20, 0
      %p103 = por %p101, %p102
      %p104 = scmp.ne.s32.totalorder %s96, %s98
      %p105 = scmp.eq.s32.totalorder %s25, 1
      %p106 = por %p104, %p105
      %p107 = scmp.ne.s32.totalorder %s98, %s99
      %p108 = scmp.eq.s32.totalorder %s25, 0
      %p109 = por %p107, %p108
      %p110 = scmp.ne.s32.totalorder %s98, %s99
      %p111 = scmp.eq.s32.totalorder %s26, 1
      %p112 = por %p110, %p111
      %p114 = scmp.ne.s32.totalorder %s99, %s113
      %p115 = scmp.eq.s32.totalorder %s26, 0
      %p116 = por %p114, %p115
      %s118 = sadd.s32 %s117, 1
      %p121 = scmp.eq.s32.totalorder %s20, 1
      %p122 = scmp.ne.s32.totalorder %s117, %s119
      %p123 = scmp.eq.s32.totalorder %s20, 0
      %p124 = por %p122, %p123
      %p125 = scmp.ne.s32.totalorder %s117, %s119
      %p126 = scmp.eq.s32.totalorder %s25, 1
      %p127 = por %p125, %p126
      %p128 = scmp.ne.s32.totalorder %s119, %s120
      %p129 = scmp.eq.s32.totalorder %s25, 0
      %p130 = por %p128, %p129
      %p131 = scmp.ne.s32.totalorder %s119, %s120
      %p132 = scmp.eq.s32.totalorder %s26, 1
      %p133 = por %p131, %p132
      %p135 = scmp.ne.s32.totalorder %s120, %s134
      %p136 = scmp.eq.s32.totalorder %s26, 0
      %p137 = por %p135, %p136
      %s139 = sadd.s32 %s138, 1
      %p142 = scmp.eq.s32.totalorder %s20, 1
      %p143 = scmp.ne.s32.totalorder %s138, %s140
      %p144 = scmp.eq.s32.totalorder %s20, 0
      %p145 = por %p143, %p144
      %p146 = scmp.ne.s32.totalorder %s138, %s140
      %p147 = scmp.eq.s32.totalorder %s25, 1
      %p148 = por %p146, %p147
      %p149 = scmp.ne.s32.totalorder %s140, %s141
      %p150 = scmp.eq.s32.totalorder %s25, 0
      %p151 = por %p149, %p150
      %p152 = scmp.ne.s32.totalorder %s140, %s141
      %p153 = scmp.eq.s32.totalorder %s26, 1
      %p154 = por %p152, %p153
      %p156 = scmp.ne.s32.totalorder %s141, %s155
      %p157 = scmp.eq.s32.totalorder %s26, 0
      %p158 = por %p156, %p157
      %s160 = sadd.s32 %s159, 1
      %p163 = scmp.eq.s32.totalorder %s20, 1
      %p164 = scmp.ne.s32.totalorder %s159, %s161
      %p165 = scmp.eq.s32.totalorder %s20, 0
      %p166 = por %p164, %p165
      %p167 = scmp.ne.s32.totalorder %s159, %s161
      %p168 = scmp.eq.s32.totalorder %s25, 1
      %p169 = por %p167, %p168
      %p170 = scmp.ne.s32.totalorder %s161, %s162
      %p171 = scmp.eq.s32.totalorder %s25, 0
      %p172 = por %p170, %p171
      %p173 = scmp.ne.s32.totalorder %s161, %s162
      %p174 = scmp.eq.s32.totalorder %s26, 1
      %p175 = por %p173, %p174
      %p177 = scmp.ne.s32.totalorder %s162, %s176
      %p178 = scmp.eq.s32.totalorder %s26, 0
      %p179 = por %p177, %p178
      %s180 = ssub.s32 %s20, %s27
      %p181 = scmp.eq.s32.totalorder %s180, 0
      %s183 = sadd.s32 %s182, 1
      %s184 = scalar_select %p181, %s182, %s183
      %p187 = pneg %p181
      %p188 = scmp.eq.s32.totalorder %s20, 1
      %p189 = por %p187, %p188
      %p190 = scmp.ne.s32.totalorder %s182, %s185
      %p191 = scmp.eq.s32.totalorder %s20, 0
      %p192 = por %p190, %p191
      %p193 = scmp.ne.s32.totalorder %s182, %s185
      %p194 = scmp.eq.s32.totalorder %s25, 1
      %p195 = por %p193, %p194
      %p196 = scmp.ne.s32.totalorder %s185, %s186
      %p197 = scmp.eq.s32.totalorder %s25, 0
      %p198 = por %p196, %p197
      %p199 = scmp.ne.s32.totalorder %s185, %s186
      %p200 = scmp.eq.s32.totalorder %s26, 1
      %p201 = por %p199, %p200
      %p203 = scmp.ne.s32.totalorder %s186, %s202
      %p204 = scmp.eq.s32.totalorder %s26, 0
      %p205 = por %p203, %p204
      %p206 = scmp.le.s32.totalorder 1, %s20
      %p207 = scmp.lt.s32.totalorder %s20, 3
      %p208 = pnand %p206, %p207
      %p209 = pneg %p208
      // Predicated region
      $region9: #{tpu_custom_call.1} parent=5 // pred_check
        _
      $region10: #{tpu_custom_call.1} parent=5 // pred_check_branch
        %211 = sbr.rel (%p208) target = $region12
      $region11: #{tpu_custom_call.1} parent=5 // pred_region
        %s212 = ssub.s32 %s20, 1
        // Predicated region
        $region13: #{tpu_custom_call.1} parent=11 // pred_check
          %p213 = pneg %p67
        $region14: #{tpu_custom_call.1} parent=11 // pred_check_branch
          %215 = sbr.rel (%p213) target = $region16
        $region15: #{tpu_custom_call.1} parent=11 // pred_region
          %217 = vsyncadd [#allocation10], 0
          %s219 = sshll.u32 %s1, 4
          %s220 = int_to_ptr.hbm [resolvable:$true] %s219
          %s221 = sshll.u32 [#allocation9], 4
          %s222 = int_to_ptr.vmem [resolvable:$true] %s221
          %224 = dma.hbm_to_vmem [thread:$0]  %s220, 48, %s222, [#allocation10]
        $region16: #{tpu_custom_call.1} parent=11 // pred_fallthru
          _
        // Predicated region
        $region17: #{tpu_custom_call.1} parent=11 // pred_check
          %p225 = pneg %p88
        $region18: #{tpu_custom_call.1} parent=11 // pred_check_branch
          %227 = sbr.rel (%p225) target = $region20
        $region19: #{tpu_custom_call.1} parent=11 // pred_region
          _
        $region20: #{tpu_custom_call.1} parent=11 // pred_fallthru
          _
        // Predicated region
        $region21: #{tpu_custom_call.1} parent=11 // pred_check
          %p228 = pneg %p109
        $region22: #{tpu_custom_call.1} parent=11 // pred_check_branch
          %230 = sbr.rel (%p228) target = $region24
        $region23: #{tpu_custom_call.1} parent=11 // pred_region
          _
        $region24: #{tpu_custom_call.1} parent=11 // pred_fallthru
          _
        // Predicated region
        $region25: #{tpu_custom_call.1} parent=11 // pred_check
          %p231 = pneg %p130
        $region26: #{tpu_custom_call.1} parent=11 // pred_check_branch
          %233 = sbr.rel (%p231) target = $region28
        $region27: #{tpu_custom_call.1} parent=11 // pred_region
          _
        $region28: #{tpu_custom_call.1} parent=11 // pred_fallthru
          _
        // Predicated region
        $region29: #{tpu_custom_call.1} parent=11 // pred_check
          %p234 = pneg %p151
        $region30: #{tpu_custom_call.1} parent=11 // pred_check_branch
          %236 = sbr.rel (%p234) target = $region32
        $region31: #{tpu_custom_call.1} parent=11 // pred_region
          _
        $region32: #{tpu_custom_call.1} parent=11 // pred_fallthru
          _
        // Predicated region
        $region33: #{tpu_custom_call.1} parent=11 // pred_check
          %p237 = pneg %p172
        $region34: #{tpu_custom_call.1} parent=11 // pred_check_branch
          %239 = sbr.rel (%p237) target = $region36
        $region35: #{tpu_custom_call.1} parent=11 // pred_region
          %241 = vsyncadd [#allocation10], 0
          %s243 = sshll.u32 %s6, 4
          %s244 = int_to_ptr.hbm [resolvable:$true] %s243
          %s245 = sshll.u32 [#allocation11], 4
          %s246 = int_to_ptr.vmem [resolvable:$true] %s245
          %248 = dma.hbm_to_vmem [thread:$0]  %s244, 128, %s246, [#allocation10]
        $region36: #{tpu_custom_call.1} parent=11 // pred_fallthru
          _
      $region12: #{tpu_custom_call.1} parent=5 // pred_fallthru
        _
      %p249 = scmp.lt.s32.totalorder %s20, 2
      // Predicated region
      $region37: #{tpu_custom_call.1} parent=5 // pred_check
        %p250 = pneg %p249
      $region38: #{tpu_custom_call.1} parent=5 // pred_check_branch
        %252 = sbr.rel (%p250) target = $region40
      $region39: #{tpu_custom_call.1} parent=5 // pred_region
        // Predicated region
        $region41: #{tpu_custom_call.1} parent=39 // pred_check
          %p253 = pneg %p40
        $region42: #{tpu_custom_call.1} parent=39 // pred_check_branch
          %255 = sbr.rel (%p253) target = $region44
        $region43: #{tpu_custom_call.1} parent=39 // pred_region
          %s256 = sand.u32 %s30, 1
          %s257 = scalar_lea.sflag [#allocation7], %s256
          %s258 = sand.u32 %s30, 1
          %s259 = smul.addr %s258, 32
          %s260 = scalar_lea.vmem [#allocation6], %s259
          %262 = vsyncadd %s257, 0
          %s263 = smul.addr %s20, 4
          %s264 = smul.addr %s263, 8
          %s265 = scalar_lea.hbm %s0, %s264
          %s267 = sshll.u32 %s265, 4
          %s268 = int_to_ptr.hbm [resolvable:$true] %s267
          %s269 = sshll.u32 %s260, 4
          %s270 = int_to_ptr.vmem [resolvable:$true] %s269
          %272 = dma.hbm_to_vmem [thread:$0]  %s268, 512, %s270, %s257
        $region44: #{tpu_custom_call.1} parent=39 // pred_fallthru
          _
      $region40: #{tpu_custom_call.1} parent=5 // pred_fallthru
        _
      %p273 = scmp.le.s32.totalorder 1, %s20
      %p274 = scmp.lt.s32.totalorder %s20, 3
      %p275 = pnand %p273, %p274
      %p276 = pneg %p275
      // Predicated region
      $region45: #{tpu_custom_call.1} parent=5 // pred_check
        _
      $region46: #{tpu_custom_call.1} parent=5 // pred_check_branch
        %278 = sbr.rel (%p275) target = $region48
      $region47: #{tpu_custom_call.1} parent=5 // pred_region
        %s279 = ssub.s32 %s20, 1
        %s280 = sand.u32 %s33, 1
        %s281 = scalar_lea.sflag [#allocation7], %s280
        %s282 = sand.u32 %s33, 1
        %s283 = smul.addr %s282, 32
        %s284 = scalar_lea.vmem [#allocation6], %s283
        // Predicated region
        $region49: #{tpu_custom_call.1} parent=47 // pred_check
          %p285 = pneg %p46
        $region50: #{tpu_custom_call.1} parent=47 // pred_check_branch
          %287 = sbr.rel (%p285) target = $region52
        $region51: #{tpu_custom_call.1} parent=47 // pred_region
          %289 = dma.done %s281, 512
        $region52: #{tpu_custom_call.1} parent=47 // pred_fallthru
          _
        // Predicated region
        $region53: #{tpu_custom_call.1} parent=47 // pred_check
          %p290 = pneg %p67
        $region54: #{tpu_custom_call.1} parent=47 // pred_check_branch
          %292 = sbr.rel (%p290) target = $region56
        $region55: #{tpu_custom_call.1} parent=47 // pred_region
          %294 = dma.done [#allocation10], 48
        $region56: #{tpu_custom_call.1} parent=47 // pred_fallthru
          _
        // Predicated region
        $region57: #{tpu_custom_call.1} parent=47 // pred_check
          %p295 = pneg %p172
        $region58: #{tpu_custom_call.1} parent=47 // pred_check_branch
          %297 = sbr.rel (%p295) target = $region60
        $region59: #{tpu_custom_call.1} parent=47 // pred_region
          %299 = dma.done [#allocation10], 128
        $region60: #{tpu_custom_call.1} parent=47 // pred_fallthru
          _
        %s300 = sand.u32 %s33, 1
        %s301 = scalar_lea.sflag [#allocation7], %s300
        %s302 = sand.u32 %s33, 1
        %s303 = smul.addr %s302, 32
        %s304 = scalar_lea.vmem [#allocation6], %s303
        %p305 = pneg %p46
        %p306 = pneg %p43
        %p307 = pneg %p67
        %p308 = pneg %p64
        %p309 = pneg %p88
        %p310 = pneg %p85
        %p311 = pneg %p109
        %p312 = pneg %p106
        %p313 = pneg %p130
        %p314 = pneg %p127
        %p315 = pneg %p151
        %p316 = pneg %p148
        %p317 = pneg %p172
        %p318 = pneg %p169
        %p319 = pneg %p198
        %p320 = pneg %p195
        %s321 = sand.u32 %s185, 1
        %s322 = scalar_lea.sflag [#allocation8], %s321
        %s323 = sand.u32 %s185, 1
        %s324 = smul.addr %s323, 24
        %s325 = scalar_lea.vmem [#allocation12], %s324
        %v326 = vld [vmem:[%s284] sm:$0xff]
        %v327 = vld [vmem:[%s284 + $0x8] sm:$0xff]
        %v328 = vld [vmem:[%s284 + $0x10] sm:$0xff]
        %329 = vst [vmem:[#allocation2] sm:$0xff] %v326
        %330 = vst [vmem:[#allocation2 + $0x8] sm:$0xff] %v327
        %331 = vst [vmem:[#allocation2 + $0x10] sm:$0xff] %v328
        %v332 = vld [vmem:[%s284] sm:$0xff]
        %v333 = vld [vmem:[%s284 + $0x8] sm:$0xff]
        %v334 = vld [vmem:[%s284 + $0x10] sm:$0xff]
        %v335 = vld [vmem:[%s284 + $0x18] sm:$0xff]
        %340 = vrot.lane.b32.xlu0 %v332, 127
        %v341 = vpop.permute.xlu0 %340
        %342 = vrot.lane.b32.xlu0 %v333, 127
        %v343 = vpop.permute.xlu0 %342
        %344 = vrot.lane.b32.xlu0 %v334, 127
        %v345 = vpop.permute.xlu0 %344
        %346 = vrot.lane.b32.xlu0 %v335, 127
        %v347 = vpop.permute.xlu0 %346
        %vm348 = vcmask 1039360
        %v349 = vsel %vm348, %v341, %v343
        %v350 = vsel %vm348, %v343, %v345
        %v351 = vsel %vm348, %v345, %v347
        %355 = vst [vmem:[#allocation2 + $0x18] sm:$0xff] %v349
        %356 = vst [vmem:[#allocation2 + $0x20] sm:$0xff] %v350
        %357 = vst [vmem:[#allocation2 + $0x28] sm:$0xff] %v351
        %v358 = vld [vmem:[%s284] sm:$0xff]
        %v359 = vld [vmem:[%s284 + $0x8] sm:$0xff]
        %v360 = vld [vmem:[%s284 + $0x10] sm:$0xff]
        %v361 = vld [vmem:[%s284 + $0x18] sm:$0xff]
        %366 = vrot.lane.b32.xlu0 %v358, 126
        %v367 = vpop.permute.xlu0 %366
        %368 = vrot.lane.b32.xlu0 %v359, 126
        %v369 = vpop.permute.xlu0 %368
        %370 = vrot.lane.b32.xlu0 %v360, 126
        %v371 = vpop.permute.xlu0 %370
        %372 = vrot.lane.b32.xlu0 %v361, 126
        %v373 = vpop.permute.xlu0 %372
        %vm374 = vcmask 1031168
        %v375 = vsel %vm374, %v367, %v369
        %v376 = vsel %vm374, %v369, %v371
        %v377 = vsel %vm374, %v371, %v373
        %381 = vst [vmem:[#allocation2 + $0x30] sm:$0xff] %v375
        %382 = vst [vmem:[#allocation2 + $0x38] sm:$0xff] %v376
        %383 = vst [vmem:[#allocation2 + $0x40] sm:$0xff] %v377
        %v384 = vld [vmem:[%s284] sm:$0xff]
        %v385 = vld [vmem:[%s284 + $0x8] sm:$0xff]
        %v386 = vld [vmem:[%s284 + $0x10] sm:$0xff]
        %v387 = vld [vmem:[%s284 + $0x18] sm:$0xff]
        %392 = vrot.lane.b32.xlu0 %v384, 110
        %v393 = vpop.permute.xlu0 %392
        %394 = vrot.lane.b32.xlu0 %v385, 110
        %v395 = vpop.permute.xlu0 %394
        %396 = vrot.lane.b32.xlu0 %v386, 110
        %v397 = vpop.permute.xlu0 %396
        %398 = vrot.lane.b32.xlu0 %v387, 110
        %v399 = vpop.permute.xlu0 %398
        %vm400 = vcmask 900096
        %v401 = vsel %vm400, %v393, %v395
        %v402 = vsel %vm400, %v395, %v397
        %v403 = vsel %vm400, %v397, %v399
        %407 = vst [vmem:[#allocation2 + $0x48] sm:$0xff] %v401
        %408 = vst [vmem:[#allocation2 + $0x50] sm:$0xff] %v402
        %409 = vst [vmem:[#allocation2 + $0x58] sm:$0xff] %v403
        %v410 = vld [vmem:[%s284] sm:$0xff]
        %v411 = vld [vmem:[%s284 + $0x8] sm:$0xff]
        %v412 = vld [vmem:[%s284 + $0x10] sm:$0xff]
        %v413 = vld [vmem:[%s284 + $0x18] sm:$0xff]
        %418 = vrot.lane.b32.xlu0 %v410, 109
        %v419 = vpop.permute.xlu0 %418
        %420 = vrot.lane.b32.xlu0 %v411, 109
        %v421 = vpop.permute.xlu0 %420
        %422 = vrot.lane.b32.xlu0 %v412, 109
        %v423 = vpop.permute.xlu0 %422
        %424 = vrot.lane.b32.xlu0 %v413, 109
        %v425 = vpop.permute.xlu0 %424
        %vm426 = vcmask 891904
        %v427 = vsel %vm426, %v419, %v421
        %v428 = vsel %vm426, %v421, %v423
        %v429 = vsel %vm426, %v423, %v425
        %433 = vst [vmem:[#allocation2 + $0x60] sm:$0xff] %v427
        %434 = vst [vmem:[#allocation2 + $0x68] sm:$0xff] %v428
        %435 = vst [vmem:[#allocation2 + $0x70] sm:$0xff] %v429
        %v436 = vld [vmem:[%s284] sm:$0xff]
        %v437 = vld [vmem:[%s284 + $0x8] sm:$0xff]
        %v438 = vld [vmem:[%s284 + $0x10] sm:$0xff]
        %v439 = vld [vmem:[%s284 + $0x18] sm:$0xff]
        %444 = vrot.lane.b32.xlu0 %v436, 108
        %v445 = vpop.permute.xlu0 %444
        %446 = vrot.lane.b32.xlu0 %v437, 108
        %v447 = vpop.permute.xlu0 %446
        %448 = vrot.lane.b32.xlu0 %v438, 108
        %v449 = vpop.permute.xlu0 %448
        %450 = vrot.lane.b32.xlu0 %v439, 108
        %v451 = vpop.permute.xlu0 %450
        %vm452 = vcmask 883712
        %v453 = vsel %vm452, %v445, %v447
        %v454 = vsel %vm452, %v447, %v449
        %v455 = vsel %vm452, %v449, %v451
        %459 = vst [vmem:[#allocation2 + $0x78] sm:$0xff] %v453
        %460 = vst [vmem:[#allocation2 + $0x80] sm:$0xff] %v454
        %461 = vst [vmem:[#allocation2 + $0x88] sm:$0xff] %v455
        %v462 = vld [vmem:[%s284] sm:$0xff]
        %v463 = vld [vmem:[%s284 + $0x8] sm:$0xff]
        %v464 = vld [vmem:[%s284 + $0x10] sm:$0xff]
        %v465 = vld [vmem:[%s284 + $0x18] sm:$0xff]
        %470 = vrot.lane.b32.xlu0 %v462, 92
        %v471 = vpop.permute.xlu0 %470
        %472 = vrot.lane.b32.xlu0 %v463, 92
        %v473 = vpop.permute.xlu0 %472
        %474 = vrot.lane.b32.xlu0 %v464, 92
        %v475 = vpop.permute.xlu0 %474
        %476 = vrot.lane.b32.xlu0 %v465, 92
        %v477 = vpop.permute.xlu0 %476
        %vm478 = vcmask 752640
        %v479 = vsel %vm478, %v471, %v473
        %v480 = vsel %vm478, %v473, %v475
        %v481 = vsel %vm478, %v475, %v477
        %485 = vst [vmem:[#allocation2 + $0x90] sm:$0xff] %v479
        %486 = vst [vmem:[#allocation2 + $0x98] sm:$0xff] %v480
        %487 = vst [vmem:[#allocation2 + $0xa0] sm:$0xff] %v481
        %v488 = vld [vmem:[%s284] sm:$0xff]
        %v489 = vld [vmem:[%s284 + $0x8] sm:$0xff]
        %v490 = vld [vmem:[%s284 + $0x10] sm:$0xff]
        %v491 = vld [vmem:[%s284 + $0x18] sm:$0xff]
        %496 = vrot.lane.b32.xlu0 %v488, 91
        %v497 = vpop.permute.xlu0 %496
        %498 = vrot.lane.b32.xlu0 %v489, 91
        %v499 = vpop.permute.xlu0 %498
        %500 = vrot.lane.b32.xlu0 %v490, 91
        %v501 = vpop.permute.xlu0 %500
        %502 = vrot.lane.b32.xlu0 %v491, 91
        %v503 = vpop.permute.xlu0 %502
        %vm504 = vcmask 744448
        %v505 = vsel %vm504, %v497, %v499
        %v506 = vsel %vm504, %v499, %v501
        %v507 = vsel %vm504, %v501, %v503
        %511 = vst [vmem:[#allocation2 + $0xa8] sm:$0xff] %v505
        %512 = vst [vmem:[#allocation2 + $0xb0] sm:$0xff] %v506
        %513 = vst [vmem:[#allocation2 + $0xb8] sm:$0xff] %v507
        %v514 = vld [vmem:[%s284] sm:$0xff]
        %v515 = vld [vmem:[%s284 + $0x8] sm:$0xff]
        %v516 = vld [vmem:[%s284 + $0x10] sm:$0xff]
        %v517 = vld [vmem:[%s284 + $0x18] sm:$0xff]
        %522 = vrot.lane.b32.xlu0 %v514, 90
        %v523 = vpop.permute.xlu0 %522
        %524 = vrot.lane.b32.xlu0 %v515, 90
        %v525 = vpop.permute.xlu0 %524
        %526 = vrot.lane.b32.xlu0 %v516, 90
        %v527 = vpop.permute.xlu0 %526
        %528 = vrot.lane.b32.xlu0 %v517, 90
        %v529 = vpop.permute.xlu0 %528
        %vm530 = vcmask 736256
        %v531 = vsel %vm530, %v523, %v525
        %v532 = vsel %vm530, %v525, %v527
        %v533 = vsel %vm530, %v527, %v529
        %537 = vst [vmem:[#allocation2 + $0xc0] sm:$0xff] %v531
        %538 = vst [vmem:[#allocation2 + $0xc8] sm:$0xff] %v532
        %539 = vst [vmem:[#allocation2 + $0xd0] sm:$0xff] %v533
        %v540 = vld [vmem:[%s2] sm:$0xff]
        %v541 = vld [vmem:[%s2 + $0x8] sm:$0xff]
        %v542 = vld [vmem:[#allocation2] sm:$0xff]
        %v543 = vld [vmem:[#allocation2 + $0x8] sm:$0xff]
        %v544 = vld [vmem:[#allocation2 + $0x10] sm:$0xff]
        %v545 = vld [vmem:[#allocation2 + $0x18] sm:$0xff]
        %v546 = vld [vmem:[#allocation2 + $0x20] sm:$0xff]
        %v547 = vld [vmem:[#allocation2 + $0x28] sm:$0xff]
        %v548 = vld [vmem:[#allocation2 + $0x30] sm:$0xff]
        %v549 = vld [vmem:[#allocation2 + $0x38] sm:$0xff]
        %v550 = vld [vmem:[#allocation2 + $0x40] sm:$0xff]
        %v551 = vld [vmem:[#allocation2 + $0x48] sm:$0xff]
        %v552 = vld [vmem:[#allocation2 + $0x50] sm:$0xff]
        %v553 = vld [vmem:[#allocation2 + $0x58] sm:$0xff]
        %v554 = vld [vmem:[#allocation2 + $0x60] sm:$0xff]
        %v555 = vld [vmem:[#allocation2 + $0x68] sm:$0xff]
        %v556 = vld [vmem:[#allocation2 + $0x70] sm:$0xff]
        %v557 = vld [vmem:[#allocation2 + $0x78] sm:$0xff]
        %v558 = vld [vmem:[#allocation2 + $0x80] sm:$0xff]
        %v559 = vld [vmem:[#allocation2 + $0x88] sm:$0xff]
        %v560 = vld [vmem:[#allocation2 + $0x90] sm:$0xff]
        %v561 = vld [vmem:[#allocation2 + $0x98] sm:$0xff]
        %v562 = vld [vmem:[#allocation2 + $0xa0] sm:$0xff]
        %v563 = vld [vmem:[#allocation2 + $0xa8] sm:$0xff]
        %v564 = vld [vmem:[#allocation2 + $0xb0] sm:$0xff]
        %v565 = vld [vmem:[#allocation2 + $0xb8] sm:$0xff]
        %v566 = vld [vmem:[#allocation2 + $0xc0] sm:$0xff]
        %v567 = vld [vmem:[#allocation2 + $0xc8] sm:$0xff]
        %v568 = vld [vmem:[#allocation2 + $0xd0] sm:$0xff]
        %v569 = vld [vmem:[%s3] sm:$0xff]
        %v570 = vld [vmem:[%s3 + $0x8] sm:$0xff]
        %572 = vset.pattern.permute.xlu0 0
        %573 = vperm.xlu0 %572, %v569
        %v574 = vpop.permute.xlu0 %573
        %577 = vset.pattern.permute.xlu0 0
        %578 = vperm.xlu0 %577, %v570
        %v579 = vpop.permute.xlu0 %578
        %vm581 = vcmask 588800
        %v583 = vsel %vm581, %v540, 0
        %v586 = vsel %vm581, %v541, 0
        %588 = vmatpush.msra.mxu0 0.0
        %589 = vmatpush.msra.mxu0 0.0
        %590 = vmatpush.msra.mxu0 0.0
        %591 = vmatpush.msra.mxu0 0.0
        %592 = vmatpush.msra.mxu0 0.0
        %593 = vmatpush.msra.mxu0 0.0
        %594 = vmatpush.msra.mxu0 0.0
        %595 = vmatpush.msra.mxu0 %v566
        %596 = vmatpush.msra.mxu0 %v563
        %597 = vmatpush.msra.mxu0 %v560
        %598 = vmatpush.msra.mxu0 %v557
        %599 = vmatpush.msra.mxu0 %v554
        %600 = vmatpush.msra.mxu0 %v551
        %601 = vmatpush.msra.mxu0 %v548
        %602 = vmatpush.msra.mxu0 %v545
        %603 = vmatpush.msra.mxu0 %v542
        %604 = vmatmul.f32.gmra.mxu0 %v583
        %v605 = vpop.f32.mrf.mxu0
        %v606 = vadd.f32 %v574, %v605
        %607 = vmatmul.f32.gmra.mxu0 %v586
        %v608 = vpop.f32.mrf.mxu0
        %v609 = vadd.f32 %v579, %v608
        %610 = vdwg.mxu0
        %611 = vmatpush.msra.mxu0 0.0
        %612 = vmatpush.msra.mxu0 0.0
        %613 = vmatpush.msra.mxu0 0.0
        %614 = vmatpush.msra.mxu0 0.0
        %615 = vmatpush.msra.mxu0 0.0
        %616 = vmatpush.msra.mxu0 0.0
        %617 = vmatpush.msra.mxu0 0.0
        %618 = vmatpush.msra.mxu0 %v567
        %619 = vmatpush.msra.mxu0 %v564
        %620 = vmatpush.msra.mxu0 %v561
        %621 = vmatpush.msra.mxu0 %v558
        %622 = vmatpush.msra.mxu0 %v555
        %623 = vmatpush.msra.mxu0 %v552
        %624 = vmatpush.msra.mxu0 %v549
        %625 = vmatpush.msra.mxu0 %v546
        %626 = vmatpush.msra.mxu0 %v543
        %627 = vmatmul.f32.gmra.mxu0 %v583
        %v628 = vpop.f32.mrf.mxu0
        %v629 = vadd.f32 %v574, %v628
        %630 = vmatmul.f32.gmra.mxu0 %v586
        %v631 = vpop.f32.mrf.mxu0
        %v632 = vadd.f32 %v579, %v631
        %633 = vdwg.mxu0
        %634 = vmatpush.msra.mxu0 0.0
        %635 = vmatpush.msra.mxu0 0.0
        %636 = vmatpush.msra.mxu0 0.0
        %637 = vmatpush.msra.mxu0 0.0
        %638 = vmatpush.msra.mxu0 0.0
        %639 = vmatpush.msra.mxu0 0.0
        %640 = vmatpush.msra.mxu0 0.0
        %641 = vmatpush.msra.mxu0 %v568
        %642 = vmatpush.msra.mxu0 %v565
        %643 = vmatpush.msra.mxu0 %v562
        %644 = vmatpush.msra.mxu0 %v559
        %645 = vmatpush.msra.mxu0 %v556
        %646 = vmatpush.msra.mxu0 %v553
        %647 = vmatpush.msra.mxu0 %v550
        %648 = vmatpush.msra.mxu0 %v547
        %649 = vmatpush.msra.mxu0 %v544
        %650 = vmatmul.f32.gmra.mxu0 %v583
        %v651 = vpop.f32.mrf.mxu0
        %v652 = vadd.f32 %v574, %v651
        %653 = vmatmul.f32.gmra.mxu0 %v586
        %v654 = vpop.f32.mrf.mxu0
        %v655 = vadd.f32 %v579, %v654
        %656 = vdwg.mxu0
        %v657 = vmax.f32 %v606, 0.0
        %v658 = vmax.f32 %v629, 0.0
        %v659 = vmax.f32 %v652, 0.0
        %v660 = vmax.f32 %v609, 0.0
        %v661 = vmax.f32 %v632, 0.0
        %v662 = vmax.f32 %v655, 0.0
        %663 = vst [vmem:[#allocation5] sm:$0xff] %v657
        %664 = vst [vmem:[#allocation5 + $0x8] sm:$0xff] %v658
        %665 = vst [vmem:[#allocation5 + $0x10] sm:$0xff] %v659
        %666 = vst [vmem:[#allocation3] sm:$0xff] 0.0
        %667 = vst [vmem:[#allocation3 + $0x20] sm:$0xff] 0.0
        %v668 = vld [vmem:[#allocation9] sm:$0x7]
        %v670 = vperm.slane %v668, 0
        %v671 = vperm.slane %v668, 1
        %v672 = vperm.slane %v668, 2
        %v676 = vmul.f32 %v660, %v670
        %v677 = vmul.f32 %v661, %v671
        %v678 = vmul.f32 %v662, %v672
        %679 = vst [vmem:[#allocation3 + $0x8] sm:$0xff] %v676
        %680 = vst [vmem:[#allocation3 + $0x10] sm:$0xff] %v677
        %681 = vst [vmem:[#allocation3 + $0x18] sm:$0xff] %v678
        %v682 = vld [vmem:[#allocation3] sm:$0xff]
        %v683 = vld [vmem:[#allocation3 + $0x8] sm:$0xff]
        %v684 = vld [vmem:[#allocation3 + $0x10] sm:$0xff]
        %v685 = vld [vmem:[#allocation3 + $0x18] sm:$0xff]
        %690 = vrot.lane.b32.xlu0 %v682, 19
        %v691 = vpop.permute.xlu0 %690
        %692 = vrot.lane.b32.xlu0 %v683, 19
        %v693 = vpop.permute.xlu0 %692
        %694 = vrot.lane.b32.xlu0 %v684, 19
        %v695 = vpop.permute.xlu0 %694
        %696 = vrot.lane.b32.xlu0 %v685, 19
        %v697 = vpop.permute.xlu0 %696
        %vm698 = vcmask 154624
        %v699 = vsel %vm698, %v691, %v693
        %v700 = vsel %vm698, %v693, %v695
        %v701 = vsel %vm698, %v695, %v697
        %705 = vst [vmem:[#allocation4] sm:$0xff] %v699
        %706 = vst [vmem:[#allocation4 + $0x8] sm:$0xff] %v700
        %707 = vst [vmem:[#allocation4 + $0x10] sm:$0xff] %v701
        %v708 = vld [vmem:[#allocation3] sm:$0xff]
        %v709 = vld [vmem:[#allocation3 + $0x8] sm:$0xff]
        %v710 = vld [vmem:[#allocation3 + $0x10] sm:$0xff]
        %v711 = vld [vmem:[#allocation3 + $0x18] sm:$0xff]
        %716 = vrot.lane.b32.xlu0 %v708, 18
        %v717 = vpop.permute.xlu0 %716
        %718 = vrot.lane.b32.xlu0 %v709, 18
        %v719 = vpop.permute.xlu0 %718
        %720 = vrot.lane.b32.xlu0 %v710, 18
        %v721 = vpop.permute.xlu0 %720
        %722 = vrot.lane.b32.xlu0 %v711, 18
        %v723 = vpop.permute.xlu0 %722
        %vm724 = vcmask 146432
        %v725 = vsel %vm724, %v717, %v719
        %v726 = vsel %vm724, %v719, %v721
        %v727 = vsel %vm724, %v721, %v723
        %731 = vst [vmem:[#allocation4 + $0x18] sm:$0xff] %v725
        %732 = vst [vmem:[#allocation4 + $0x20] sm:$0xff] %v726
        %733 = vst [vmem:[#allocation4 + $0x28] sm:$0xff] %v727
        %v734 = vld [vmem:[#allocation3] sm:$0xff]
        %v735 = vld [vmem:[#allocation3 + $0x8] sm:$0xff]
        %v736 = vld [vmem:[#allocation3 + $0x10] sm:$0xff]
        %v737 = vld [vmem:[#allocation3 + $0x18] sm:$0xff]
        %742 = vrot.lane.b32.xlu0 %v734, 17
        %v743 = vpop.permute.xlu0 %742
        %744 = vrot.lane.b32.xlu0 %v735, 17
        %v745 = vpop.permute.xlu0 %744
        %746 = vrot.lane.b32.xlu0 %v736, 17
        %v747 = vpop.permute.xlu0 %746
        %748 = vrot.lane.b32.xlu0 %v737, 17
        %v749 = vpop.permute.xlu0 %748
        %vm750 = vcmask 138240
        %v751 = vsel %vm750, %v743, %v745
        %v752 = vsel %vm750, %v745, %v747
        %v753 = vsel %vm750, %v747, %v749
        %757 = vst [vmem:[#allocation4 + $0x30] sm:$0xff] %v751
        %758 = vst [vmem:[#allocation4 + $0x38] sm:$0xff] %v752
        %759 = vst [vmem:[#allocation4 + $0x40] sm:$0xff] %v753
        %v760 = vld [vmem:[#allocation3] sm:$0xff]
        %v761 = vld [vmem:[#allocation3 + $0x8] sm:$0xff]
        %v762 = vld [vmem:[#allocation3 + $0x10] sm:$0xff]
        %v763 = vld [vmem:[#allocation3 + $0x18] sm:$0xff]
        %768 = vrot.lane.b32.xlu0 %v760, 1
        %v769 = vpop.permute.xlu0 %768
        %770 = vrot.lane.b32.xlu0 %v761, 1
        %v771 = vpop.permute.xlu0 %770
        %772 = vrot.lane.b32.xlu0 %v762, 1
        %v773 = vpop.permute.xlu0 %772
        %774 = vrot.lane.b32.xlu0 %v763, 1
        %v775 = vpop.permute.xlu0 %774
        %vm776 = vcmask 7168
        %v777 = vsel %vm776, %v769, %v771
        %v778 = vsel %vm776, %v771, %v773
        %v779 = vsel %vm776, %v773, %v775
        %783 = vst [vmem:[#allocation4 + $0x48] sm:$0xff] %v777
        %784 = vst [vmem:[#allocation4 + $0x50] sm:$0xff] %v778
        %785 = vst [vmem:[#allocation4 + $0x58] sm:$0xff] %v779
        %v786 = vld [vmem:[#allocation3 + $0x8] sm:$0xff]
        %v787 = vld [vmem:[#allocation3 + $0x10] sm:$0xff]
        %v788 = vld [vmem:[#allocation3 + $0x18] sm:$0xff]
        %789 = vst [vmem:[#allocation4 + $0x60] sm:$0xff] %v786
        %790 = vst [vmem:[#allocation4 + $0x68] sm:$0xff] %v787
        %791 = vst [vmem:[#allocation4 + $0x70] sm:$0xff] %v788
        %v792 = vld [vmem:[#allocation3 + $0x8] sm:$0xff]
        %v793 = vld [vmem:[#allocation3 + $0x10] sm:$0xff]
        %v794 = vld [vmem:[#allocation3 + $0x18] sm:$0xff]
        %v795 = vld [vmem:[#allocation3 + $0x20] sm:$0xff]
        %800 = vrot.lane.b32.xlu0 %v792, 127
        %v801 = vpop.permute.xlu0 %800
        %802 = vrot.lane.b32.xlu0 %v793, 127
        %v803 = vpop.permute.xlu0 %802
        %804 = vrot.lane.b32.xlu0 %v794, 127
        %v805 = vpop.permute.xlu0 %804
        %806 = vrot.lane.b32.xlu0 %v795, 127
        %v807 = vpop.permute.xlu0 %806
        %v808 = vsel %vm348, %v801, %v803
        %v809 = vsel %vm348, %v803, %v805
        %v810 = vsel %vm348, %v805, %v807
        %814 = vst [vmem:[#allocation4 + $0x78] sm:$0xff] %v808
        %815 = vst [vmem:[#allocation4 + $0x80] sm:$0xff] %v809
        %816 = vst [vmem:[#allocation4 + $0x88] sm:$0xff] %v810
        %v817 = vld [vmem:[#allocation3 + $0x8] sm:$0xff]
        %v818 = vld [vmem:[#allocation3 + $0x10] sm:$0xff]
        %v819 = vld [vmem:[#allocation3 + $0x18] sm:$0xff]
        %v820 = vld [vmem:[#allocation3 + $0x20] sm:$0xff]
        %825 = vrot.lane.b32.xlu0 %v817, 111
        %v826 = vpop.permute.xlu0 %825
        %827 = vrot.lane.b32.xlu0 %v818, 111
        %v828 = vpop.permute.xlu0 %827
        %829 = vrot.lane.b32.xlu0 %v819, 111
        %v830 = vpop.permute.xlu0 %829
        %831 = vrot.lane.b32.xlu0 %v820, 111
        %v832 = vpop.permute.xlu0 %831
        %vm833 = vcmask 908288
        %v834 = vsel %vm833, %v826, %v828
        %v835 = vsel %vm833, %v828, %v830
        %v836 = vsel %vm833, %v830, %v832
        %840 = vst [vmem:[#allocation4 + $0x90] sm:$0xff] %v834
        %841 = vst [vmem:[#allocation4 + $0x98] sm:$0xff] %v835
        %842 = vst [vmem:[#allocation4 + $0xa0] sm:$0xff] %v836
        %v843 = vld [vmem:[#allocation3 + $0x8] sm:$0xff]
        %v844 = vld [vmem:[#allocation3 + $0x10] sm:$0xff]
        %v845 = vld [vmem:[#allocation3 + $0x18] sm:$0xff]
        %v846 = vld [vmem:[#allocation3 + $0x20] sm:$0xff]
        %851 = vrot.lane.b32.xlu0 %v843, 110
        %v852 = vpop.permute.xlu0 %851
        %853 = vrot.lane.b32.xlu0 %v844, 110
        %v854 = vpop.permute.xlu0 %853
        %855 = vrot.lane.b32.xlu0 %v845, 110
        %v856 = vpop.permute.xlu0 %855
        %857 = vrot.lane.b32.xlu0 %v846, 110
        %v858 = vpop.permute.xlu0 %857
        %v859 = vsel %vm400, %v852, %v854
        %v860 = vsel %vm400, %v854, %v856
        %v861 = vsel %vm400, %v856, %v858
        %865 = vst [vmem:[#allocation4 + $0xa8] sm:$0xff] %v859
        %866 = vst [vmem:[#allocation4 + $0xb0] sm:$0xff] %v860
        %867 = vst [vmem:[#allocation4 + $0xb8] sm:$0xff] %v861
        %v868 = vld [vmem:[#allocation3 + $0x8] sm:$0xff]
        %v869 = vld [vmem:[#allocation3 + $0x10] sm:$0xff]
        %v870 = vld [vmem:[#allocation3 + $0x18] sm:$0xff]
        %v871 = vld [vmem:[#allocation3 + $0x20] sm:$0xff]
        %876 = vrot.lane.b32.xlu0 %v868, 109
        %v877 = vpop.permute.xlu0 %876
        %878 = vrot.lane.b32.xlu0 %v869, 109
        %v879 = vpop.permute.xlu0 %878
        %880 = vrot.lane.b32.xlu0 %v870, 109
        %v881 = vpop.permute.xlu0 %880
        %882 = vrot.lane.b32.xlu0 %v871, 109
        %v883 = vpop.permute.xlu0 %882
        %v884 = vsel %vm426, %v877, %v879
        %v885 = vsel %vm426, %v879, %v881
        %v886 = vsel %vm426, %v881, %v883
        %890 = vst [vmem:[#allocation4 + $0xc0] sm:$0xff] %v884
        %891 = vst [vmem:[#allocation4 + $0xc8] sm:$0xff] %v885
        %892 = vst [vmem:[#allocation4 + $0xd0] sm:$0xff] %v886
        %v893 = vld [vmem:[%s4] sm:$0xff]
        %v894 = vld [vmem:[#allocation4] sm:$0xff]
        %v895 = vld [vmem:[#allocation4 + $0x8] sm:$0xff]
        %v896 = vld [vmem:[#allocation4 + $0x10] sm:$0xff]
        %v897 = vld [vmem:[#allocation4 + $0x18] sm:$0xff]
        %v898 = vld [vmem:[#allocation4 + $0x20] sm:$0xff]
        %v899 = vld [vmem:[#allocation4 + $0x28] sm:$0xff]
        %v900 = vld [vmem:[#allocation4 + $0x30] sm:$0xff]
        %v901 = vld [vmem:[#allocation4 + $0x38] sm:$0xff]
        %v902 = vld [vmem:[#allocation4 + $0x40] sm:$0xff]
        %v903 = vld [vmem:[#allocation4 + $0x48] sm:$0xff]
        %v904 = vld [vmem:[#allocation4 + $0x50] sm:$0xff]
        %v905 = vld [vmem:[#allocation4 + $0x58] sm:$0xff]
        %v906 = vld [vmem:[#allocation4 + $0x60] sm:$0xff]
        %v907 = vld [vmem:[#allocation4 + $0x68] sm:$0xff]
        %v908 = vld [vmem:[#allocation4 + $0x70] sm:$0xff]
        %v909 = vld [vmem:[#allocation4 + $0x78] sm:$0xff]
        %v910 = vld [vmem:[#allocation4 + $0x80] sm:$0xff]
        %v911 = vld [vmem:[#allocation4 + $0x88] sm:$0xff]
        %v912 = vld [vmem:[#allocation4 + $0x90] sm:$0xff]
        %v913 = vld [vmem:[#allocation4 + $0x98] sm:$0xff]
        %v914 = vld [vmem:[#allocation4 + $0xa0] sm:$0xff]
        %v915 = vld [vmem:[#allocation4 + $0xa8] sm:$0xff]
        %v916 = vld [vmem:[#allocation4 + $0xb0] sm:$0xff]
        %v917 = vld [vmem:[#allocation4 + $0xb8] sm:$0xff]
        %v918 = vld [vmem:[#allocation4 + $0xc0] sm:$0xff]
        %v919 = vld [vmem:[#allocation4 + $0xc8] sm:$0xff]
        %v920 = vld [vmem:[#allocation4 + $0xd0] sm:$0xff]
        %v921 = vld [vmem:[%s5] sm:$0xff]
        %923 = vset.pattern.permute.xlu0 0
        %924 = vperm.xlu0 %923, %v921
        %v925 = vpop.permute.xlu0 %924
        %v928 = vsel %vm581, %v893, 0
        %930 = vmatpush.msra.mxu0 0.0
        %931 = vmatpush.msra.mxu0 0.0
        %932 = vmatpush.msra.mxu0 0.0
        %933 = vmatpush.msra.mxu0 0.0
        %934 = vmatpush.msra.mxu0 0.0
        %935 = vmatpush.msra.mxu0 0.0
        %936 = vmatpush.msra.mxu0 0.0
        %937 = vmatpush.msra.mxu0 %v918
        %938 = vmatpush.msra.mxu0 %v915
        %939 = vmatpush.msra.mxu0 %v912
        %940 = vmatpush.msra.mxu0 %v909
        %941 = vmatpush.msra.mxu0 %v906
        %942 = vmatpush.msra.mxu0 %v903
        %943 = vmatpush.msra.mxu0 %v900
        %944 = vmatpush.msra.mxu0 %v897
        %945 = vmatpush.msra.mxu0 %v894
        %946 = vmatmul.f32.gmra.mxu0 %v928
        %v947 = vpop.f32.mrf.mxu0
        %v948 = vadd.f32 %v925, %v947
        %949 = vdwg.mxu0
        %950 = vmatpush.msra.mxu0 0.0
        %951 = vmatpush.msra.mxu0 0.0
        %952 = vmatpush.msra.mxu0 0.0
        %953 = vmatpush.msra.mxu0 0.0
        %954 = vmatpush.msra.mxu0 0.0
        %955 = vmatpush.msra.mxu0 0.0
        %956 = vmatpush.msra.mxu0 0.0
        %957 = vmatpush.msra.mxu0 %v919
        %958 = vmatpush.msra.mxu0 %v916
        %959 = vmatpush.msra.mxu0 %v913
        %960 = vmatpush.msra.mxu0 %v910
        %961 = vmatpush.msra.mxu0 %v907
        %962 = vmatpush.msra.mxu0 %v904
        %963 = vmatpush.msra.mxu0 %v901
        %964 = vmatpush.msra.mxu0 %v898
        %965 = vmatpush.msra.mxu0 %v895
        %966 = vmatmul.f32.gmra.mxu0 %v928
        %v967 = vpop.f32.mrf.mxu0
        %v968 = vadd.f32 %v925, %v967
        %969 = vdwg.mxu0
        %970 = vmatpush.msra.mxu0 0.0
        %971 = vmatpush.msra.mxu0 0.0
        %972 = vmatpush.msra.mxu0 0.0
        %973 = vmatpush.msra.mxu0 0.0
        %974 = vmatpush.msra.mxu0 0.0
        %975 = vmatpush.msra.mxu0 0.0
        %976 = vmatpush.msra.mxu0 0.0
        %977 = vmatpush.msra.mxu0 %v920
        %978 = vmatpush.msra.mxu0 %v917
        %979 = vmatpush.msra.mxu0 %v914
        %980 = vmatpush.msra.mxu0 %v911
        %981 = vmatpush.msra.mxu0 %v908
        %982 = vmatpush.msra.mxu0 %v905
        %983 = vmatpush.msra.mxu0 %v902
        %984 = vmatpush.msra.mxu0 %v899
        %985 = vmatpush.msra.mxu0 %v896
        %986 = vmatmul.f32.gmra.mxu0 %v928
        %v987 = vpop.f32.mrf.mxu0
        %v988 = vadd.f32 %v925, %v987
        %989 = vdwg.mxu0
        %v990 = vmax.f32 %v948, 0.0
        %v991 = vmax.f32 %v968, 0.0
        %v992 = vmax.f32 %v988, 0.0
        %993 = vst [vmem:[#allocation5 + $0x18] sm:$0xff] %v990
        %994 = vst [vmem:[#allocation5 + $0x20] sm:$0xff] %v991
        %995 = vst [vmem:[#allocation5 + $0x28] sm:$0xff] %v992
        %v996 = vld [vmem:[#allocation11] sm:$0xff]
        %v997 = vld [vmem:[#allocation5] sm:$0xff]
        %v998 = vld [vmem:[#allocation5 + $0x8] sm:$0xff]
        %v999 = vld [vmem:[#allocation5 + $0x10] sm:$0xff]
        %v1000 = vld [vmem:[#allocation5 + $0x18] sm:$0xff]
        %v1001 = vld [vmem:[#allocation5 + $0x20] sm:$0xff]
        %v1002 = vld [vmem:[#allocation5 + $0x28] sm:$0xff]
        %vm1003 = vcmask 130048
        %v1005 = vsel %vm1003, %v996, 0
        %1007 = vmatpush.msra.mxu0 0.0
        %1008 = vmatpush.msra.mxu0 0.0
        %1009 = vmatpush.msra.mxu0 0.0
        %1010 = vmatpush.msra.mxu0 0.0
        %1011 = vmatpush.msra.mxu0 0.0
        %1012 = vmatpush.msra.mxu0 0.0
        %1013 = vmatpush.msra.mxu0 0.0
        %1014 = vmatpush.msra.mxu0 0.0
        %1015 = vmatpush.msra.mxu0 0.0
        %1016 = vmatpush.msra.mxu0 0.0
        %1017 = vmatpush.msra.mxu0 0.0
        %1018 = vmatpush.msra.mxu0 0.0
        %1019 = vmatpush.msra.mxu0 0.0
        %1020 = vmatpush.msra.mxu0 0.0
        %1021 = vmatpush.msra.mxu0 %v1000
        %1022 = vmatpush.msra.mxu0 %v997
        %1023 = vmatmul.f32.gmra.mxu0 %v1005
        %v1024 = vpop.f32.mrf.mxu0
        %v1025 = vadd.f32 0.0, %v1024
        %1026 = vdwg.mxu0
        %1027 = vmatpush.msra.mxu0 0.0
        %1028 = vmatpush.msra.mxu0 0.0
        %1029 = vmatpush.msra.mxu0 0.0
        %1030 = vmatpush.msra.mxu0 0.0
        %1031 = vmatpush.msra.mxu0 0.0
        %1032 = vmatpush.msra.mxu0 0.0
        %1033 = vmatpush.msra.mxu0 0.0
        %1034 = vmatpush.msra.mxu0 0.0
        %1035 = vmatpush.msra.mxu0 0.0
        %1036 = vmatpush.msra.mxu0 0.0
        %1037 = vmatpush.msra.mxu0 0.0
        %1038 = vmatpush.msra.mxu0 0.0
        %1039 = vmatpush.msra.mxu0 0.0
        %1040 = vmatpush.msra.mxu0 0.0
        %1041 = vmatpush.msra.mxu0 %v1001
        %1042 = vmatpush.msra.mxu0 %v998
        %1043 = vmatmul.f32.gmra.mxu0 %v1005
        %v1044 = vpop.f32.mrf.mxu0
        %v1045 = vadd.f32 0.0, %v1044
        %1046 = vdwg.mxu0
        %1047 = vmatpush.msra.mxu0 0.0
        %1048 = vmatpush.msra.mxu0 0.0
        %1049 = vmatpush.msra.mxu0 0.0
        %1050 = vmatpush.msra.mxu0 0.0
        %1051 = vmatpush.msra.mxu0 0.0
        %1052 = vmatpush.msra.mxu0 0.0
        %1053 = vmatpush.msra.mxu0 0.0
        %1054 = vmatpush.msra.mxu0 0.0
        %1055 = vmatpush.msra.mxu0 0.0
        %1056 = vmatpush.msra.mxu0 0.0
        %1057 = vmatpush.msra.mxu0 0.0
        %1058 = vmatpush.msra.mxu0 0.0
        %1059 = vmatpush.msra.mxu0 0.0
        %1060 = vmatpush.msra.mxu0 0.0
        %1061 = vmatpush.msra.mxu0 %v1002
        %1062 = vmatpush.msra.mxu0 %v999
        %1063 = vmatmul.f32.gmra.mxu0 %v1005
        %v1064 = vpop.f32.mrf.mxu0
        %v1065 = vadd.f32 0.0, %v1064
        %1066 = vdwg.mxu0
        %v1067 = vld [vmem:[%s284] sm:$0xff]
        %v1068 = vld [vmem:[%s284 + $0x8] sm:$0xff]
        %v1069 = vld [vmem:[%s284 + $0x10] sm:$0xff]
        %v1070 = vld [vmem:[%s284 + $0x18] sm:$0xff]
        %1074 = vrot.lane.b32.xlu0 %v1025, 19
        %v1075 = vpop.permute.xlu0 %1074
        %1076 = vrot.lane.b32.xlu0 %v1045, 19
        %v1077 = vpop.permute.xlu0 %1076
        %1078 = vrot.lane.b32.xlu0 %v1065, 19
        %v1079 = vpop.permute.xlu0 %1078
        %v1080 = vsel %vm698, %v1075, %v1077
        %v1081 = vsel %vm698, %v1077, %v1079
        %v1086 = vadd.f32 %v1067, %v1075
        %v1087 = vadd.f32 %v1068, %v1080
        %v1088 = vadd.f32 %v1069, %v1081
        %v1089 = vadd.f32 %v1070, %v1079
        %1094 = vrot.lane.b32.xlu0 %v1086, 109
        %v1095 = vpop.permute.xlu0 %1094
        %1096 = vrot.lane.b32.xlu0 %v1087, 109
        %v1097 = vpop.permute.xlu0 %1096
        %1098 = vrot.lane.b32.xlu0 %v1088, 109
        %v1099 = vpop.permute.xlu0 %1098
        %1100 = vrot.lane.b32.xlu0 %v1089, 109
        %v1101 = vpop.permute.xlu0 %1100
        %v1102 = vsel %vm426, %v1095, %v1097
        %v1103 = vsel %vm426, %v1097, %v1099
        %v1104 = vsel %vm426, %v1099, %v1101
        %1108 = vst [vmem:[%s325] sm:$0xff] %v1102
        %1109 = vst [vmem:[%s325 + $0x8] sm:$0xff] %v1103
        %1110 = vst [vmem:[%s325 + $0x10] sm:$0xff] %v1104
        %s1111 = sand.u32 %s185, 1
        %s1112 = scalar_lea.sflag [#allocation8], %s1111
        %s1113 = sand.u32 %s185, 1
        %s1114 = smul.addr %s1113, 24
        %s1115 = scalar_lea.vmem [#allocation12], %s1114
        // Predicated region
        $region61: #{tpu_custom_call.1} parent=47 // pred_check
          %p1116 = pneg %p195
        $region62: #{tpu_custom_call.1} parent=47 // pred_check_branch
          %1118 = sbr.rel (%p1116) target = $region64
        $region63: #{tpu_custom_call.1} parent=47 // pred_region
          %1120 = vsyncadd %s1112, 0
          %s1121 = smul.addr %s25, 3
          %s1122 = smul.addr %s1121, 8
          %s1123 = scalar_lea.hbm %s7, %s1122
          %s1125 = sshll.u32 %s1115, 4
          %s1126 = int_to_ptr.vmem [resolvable:$true] %s1125
          %s1127 = sshll.u32 %s1123, 4
          %s1128 = int_to_ptr.hbm [resolvable:$true] %s1127
          %1130 = dma.vmem_to_hbm [thread:$0]  %s1126, 384, %s1128, %s1112
        $region64: #{tpu_custom_call.1} parent=47 // pred_fallthru
          _
      $region48: #{tpu_custom_call.1} parent=5 // pred_fallthru
        _
      %p1131 = scmp.le.s32.totalorder 2, %s20
      // Predicated region
      $region65: #{tpu_custom_call.1} parent=5 // pred_check
        %p1132 = pneg %p1131
      $region66: #{tpu_custom_call.1} parent=5 // pred_check_branch
        %1134 = sbr.rel (%p1132) target = $region68
      $region67: #{tpu_custom_call.1} parent=5 // pred_region
        %s1135 = ssub.s32 %s20, 2
        // Predicated region
        $region69: #{tpu_custom_call.1} parent=67 // pred_check
          %p1136 = pneg %p201
        $region70: #{tpu_custom_call.1} parent=67 // pred_check_branch
          %1138 = sbr.rel (%p1136) target = $region72
        $region71: #{tpu_custom_call.1} parent=67 // pred_region
          %s1139 = sand.u32 %s186, 1
          %s1140 = scalar_lea.sflag [#allocation8], %s1139
          %s1141 = sand.u32 %s186, 1
          %s1142 = smul.addr %s1141, 24
          %s1143 = scalar_lea.vmem [#allocation12], %s1142
          %1145 = dma.done %s1140, 384
        $region72: #{tpu_custom_call.1} parent=67 // pred_fallthru
          _
      $region68: #{tpu_custom_call.1} parent=5 // pred_fallthru
        _
    $region6: #{tpu_custom_call.1} parent=1 // loop_footer
      %s24 = sadd.s32 1, %s20
    $region7: #{tpu_custom_call.1} parent=1 // loop_footer_branch
      %19 = sbr.rel target = $region3
    $region8: #{tpu_custom_call.1} parent=1 // loop_exit
      _
    %1146 = vsyncpa [#allocation7], 1
    %s1147 = scalar_lea.sflag [#allocation7], 1
    %1148 = vsyncpa %s1147, 1
    %1149 = vsyncpa [#allocation10], 1
    %1150 = vsyncpa [#allocation8], 1
    %s1151 = scalar_lea.sflag [#allocation8], 1
    %1152 = vsyncpa %s1151, 1

</llo_original>
